<compile_context>
chip_gen: v5e
topology: v5e:2x2
jax: 0.10.0
libtpu: 0.0.40
codegen_flags: <defaults>
</compile_context>

<pallas_src>
import functools

import jax
import jax.numpy as jnp
from jax.experimental import pallas as pl
from jax.experimental.pallas import tpu as pltpu

LANE = 128


def _round_up(x, m):
    return (x + m - 1) // m * m


# --------------------------------------------------------------------------
# Fused [previous-BN+ReLU prologue] -> conv3x3(dilated)+bias -> partial BN stats.
# Grid: (batch, output-row blocks).  Halo handled via a VMEM scratch slab.
# --------------------------------------------------------------------------
def _conv_bn_stats_kernel(x_ref, w_ref, b_ref, sc_ref, sh_ref,
                          z_ref, st_ref, hbuf, *, dil, H, apply_relu):
    # x_ref : (H, W, Cpi)       pre-BN input image for this batch element (resident)
    # w_ref : (9*Cpi, Cpo)      3x3 taps flattened into one contraction
    # b_ref : (1, Cpo)          conv bias
    # sc_ref, sh_ref : (1, Cpi) previous block's BN scale/shift (prologue)
    # z_ref : (1, TR, W, Cpo)   conv+bias output row block (pre-BN)
    # st_ref: (1, 2, Cpo)       per-batch [sum, sum_sq] accumulator
    # hbuf  : (TR+2d, W+2d, Cpi) zero-padded, prologued input slab (VMEM scratch)
    r = pl.program_id(1)
    _, TR, W, Cpo = z_ref.shape
    Cpi = x_ref.shape[-1]
    d = dil

    scale = sc_ref[0]
    shift = sh_ref[0]

    # Build the zero-padded halo slab for this row block; the previous block's
    # BN + ReLU is fused into the row loads ("prologue").
    hbuf[...] = jnp.zeros_like(hbuf)
    row0 = r * TR - d
    for l in range(TR + 2 * d):
        g = row0 + l

        @pl.when(jnp.logical_and(g >= 0, g < H))
        def _(l=l, g=g):
            hv = x_ref[g] * scale + shift
            if apply_relu:
                hv = jnp.maximum(hv, 0.0)
            hbuf[l, d:d + W, :] = hv

    # One MXU contraction over all 9 taps: (TR*W, 9*Cpi) @ (9*Cpi, Cpo).
    taps = []
    for kh in range(3):
        for kw in range(3):
            t = hbuf[kh * d:kh * d + TR, kw * d:kw * d + W, :]
            taps.append(t.reshape(TR * W, Cpi))
    patch = jnp.concatenate(taps, axis=1)
    acc = jnp.dot(patch, w_ref[...], preferred_element_type=jnp.float32)
    acc = acc + b_ref[...]                               # conv bias

    z_ref[...] = acc.reshape(1, TR, W, Cpo)              # lane-dense store

    # Partial BatchNorm statistics, accumulated across the 'arbitrary' row axis.
    @pl.when(r == 0)
    def _():
        st_ref[...] = jnp.zeros_like(st_ref)

    s1 = jnp.sum(acc, axis=0, keepdims=True)
    s2 = jnp.sum(acc * acc, axis=0, keepdims=True)
    st_ref[...] += jnp.concatenate([s1, s2], axis=0)[None]


def conv_bn_stats(z, w_mat, b, scale, shift, *, dil, apply_relu, row_block=8):
    """z: (N,H,W,Cpi) pre-BN input. Returns (z_out (N,H,W,Cpo), stats (N,2,Cpo))."""
    N, H, W, Cpi = z.shape
    Cpo = w_mat.shape[-1]
    TR = row_block if H % row_block == 0 else H
    R = H // TR
    kernel = functools.partial(_conv_bn_stats_kernel, dil=dil, H=H,
                               apply_relu=apply_relu)
    z_out, stats = pl.pallas_call(
        kernel,
        grid=(N, R),
        in_specs=[
            pl.BlockSpec((H, W, Cpi), lambda n, r: (n, 0, 0)),        # full image / batch
            pl.BlockSpec((9 * Cpi, Cpo), lambda n, r: (0, 0)),
            pl.BlockSpec((1, Cpo), lambda n, r: (0, 0)),
            pl.BlockSpec((1, Cpi), lambda n, r: (0, 0)),
            pl.BlockSpec((1, Cpi), lambda n, r: (0, 0)),
        ],
        out_specs=[
            pl.BlockSpec((1, TR, W, Cpo), lambda n, r: (n, r, 0, 0)),
            pl.BlockSpec((1, 2, Cpo), lambda n, r: (n, 0, 0)),        # accumulator
        ],
        out_shape=[
            jax.ShapeDtypeStruct((N, H, W, Cpo), jnp.float32),
            jax.ShapeDtypeStruct((N, 2, Cpo), jnp.float32),
        ],
        scratch_shapes=[pltpu.VMEM((TR + 2 * dil, W + 2 * dil, Cpi), jnp.float32)],
        compiler_params=pltpu.CompilerParams(
            dimension_semantics=("parallel", "arbitrary"),
            vmem_limit_bytes=32 * 1024 * 1024),
    )(z.reshape(N * H, W, Cpi), w_mat, b, scale, shift)
    return z_out, stats


# --------------------------------------------------------------------------
# Fused final-block BN+ReLU + MaxPool 2x2 stride 2 (ceil_mode).  Vectorized:
# one lane-dense (Ho, Wo, 128) store per image.
# --------------------------------------------------------------------------
def _bn_relu_pool_kernel(x_ref, sc_ref, sh_ref, o_ref):
    # x_ref: (He, Wo, 2, Cp)  pre-BN conv output with W split into (Wo, 2) pairs
    # o_ref: (1, Ho, Wo, Cp)
    He, Wo = x_ref.shape[0], x_ref.shape[1]
    Cp = x_ref.shape[-1]
    h = jnp.maximum(x_ref[...] * sc_ref[0] + sh_ref[0], 0.0)
    wmax = jnp.max(h, axis=2)                     # pool along W -> (He, Wo, Cp)
    hr = wmax.reshape(He // 2, 2, Wo, Cp)         # pair rows (leading-dim split)
    o_ref[0] = jnp.max(hr, axis=1)                # pool along H -> (Ho, Wo, Cp)


def bn_relu_maxpool(z, scale, shift):
    N, H, W, Cp = z.shape
    He, We = H + (H % 2), W + (W % 2)
    if (He, We) != (H, W):
        # ceil_mode: duplicate the edge row/col (max over a duplicate == identity)
        z = jnp.pad(z, ((0, 0), (0, He - H), (0, We - W), (0, 0)), mode="edge")
    Ho, Wo = He // 2, We // 2
    return pl.pallas_call(
        _bn_relu_pool_kernel,
        grid=(N,),
        in_specs=[
            pl.BlockSpec((He, Wo, 2, Cp), lambda n: (n, 0, 0, 0)),
            pl.BlockSpec((1, Cp), lambda n: (0, 0)),
            pl.BlockSpec((1, Cp), lambda n: (0, 0)),
        ],
        out_specs=pl.BlockSpec((1, Ho, Wo, Cp), lambda n: (n, 0, 0, 0)),
        out_shape=jax.ShapeDtypeStruct((N, Ho, Wo, Cp), jnp.float32),
        compiler_params=pltpu.CompilerParams(
            dimension_semantics=("parallel",),
            vmem_limit_bytes=32 * 1024 * 1024),
    )(z.reshape(N * He, Wo, 2, Cp), scale, shift)


# Final-block BN+ReLU when is_downsample=False.
def _bn_relu_kernel(x_ref, sc_ref, sh_ref, o_ref):
    o_ref[...] = jnp.maximum(x_ref[...] * sc_ref[0] + sh_ref[0], 0.0)


def bn_relu(z, scale, shift):
    N, H, W, Cp = z.shape
    return pl.pallas_call(
        _bn_relu_kernel,
        grid=(N,),
        in_specs=[
            pl.BlockSpec((1, H, W, Cp), lambda n: (n, 0, 0, 0)),
            pl.BlockSpec((1, Cp), lambda n: (0, 0)),
            pl.BlockSpec((1, Cp), lambda n: (0, 0)),
        ],
        out_specs=pl.BlockSpec((1, H, W, Cp), lambda n: (n, 0, 0, 0)),
        out_shape=jax.ShapeDtypeStruct((N, H, W, Cp), jnp.float32),
        compiler_params=pltpu.CompilerParams(dimension_semantics=("parallel",)),
    )(z, scale, shift)


# --------------------------------------------------------------------------
# Encode_B parameters + forward (wrapper glue).
# --------------------------------------------------------------------------
def init_encode_b_params(key, in_c, out_c):
    """3 conv blocks; conv weights (3,3,Cin,Cout), bias (Cout,), BN gamma/beta."""
    params = []
    cin = in_c
    for _ in range(3):
        kw, kb, key = jax.random.split(key, 3)
        fan_in = cin * 9
        w = jax.random.normal(kw, (3, 3, cin, out_c), jnp.float32) / jnp.sqrt(fan_in)
        b = 0.01 * jax.random.normal(kb, (out_c,), jnp.float32)
        gamma = jnp.ones((out_c,), jnp.float32)      # nn.BatchNorm2d defaults
        beta = jnp.zeros((out_c,), jnp.float32)
        params.append((w, b, gamma, beta))
        cin = out_c
    return params


def encode_b_forward(params, x_nchw, *, dilation=1, grid=(1, 1, 1),
                     is_downsample=True, eps=1e-5):
    x = jnp.transpose(x_nchw.astype(jnp.float32), (0, 2, 3, 1))     # NCHW -> NHWC
    N, H, W, in_c = x.shape
    out_c = params[0][0].shape[-1]
    cp_out = _round_up(out_c, LANE)

    # Pad channels to 128 lanes once at the boundary.
    cp_in = _round_up(in_c, LANE)
    z = jnp.pad(x, ((0, 0), (0, 0), (0, 0), (0, cp_in - in_c)))

    # Identity prologue for the first conv (raw input: no BN, no ReLU).
    scale = jnp.ones((1, cp_in), jnp.float32)
    shift = jnp.zeros((1, cp_in), jnp.float32)
    apply_relu = False
    cnt = float(N * H * W)

    for blk, (w, b, gamma, beta) in enumerate(params):
        d = dilation * grid[blk]
        cin = w.shape[2]
        cpi = _round_up(cin, LANE)
        w_p = jnp.zeros((3, 3, cpi, cp_out), jnp.float32).at[:, :, :cin, :out_c].set(w)
        w_mat = w_p.reshape(9 * cpi, cp_out)
        b_p = jnp.zeros((1, cp_out), jnp.float32).at[0, :out_c].set(b)

        z, stats = conv_bn_stats(z, w_mat, b_p, scale, shift,
                                 dil=d, apply_relu=apply_relu)

        # Finalize BatchNorm (training-mode batch stats, biased variance) into
        # per-channel (scale, shift) consumed by the NEXT stage's fused prologue.
        tot = jnp.sum(stats, axis=0)                    # (2, cp_out)
        mean = tot[0] / cnt
        var = jnp.maximum(tot[1] / cnt - mean * mean, 0.0)
        g_p = jnp.zeros((cp_out,), jnp.float32).at[:out_c].set(gamma)
        bt_p = jnp.zeros((cp_out,), jnp.float32).at[:out_c].set(beta)
        inv = g_p * jax.lax.rsqrt(var + eps)
        scale = inv[None, :]
        shift = (bt_p - mean * inv)[None, :]
        apply_relu = True

    if is_downsample:
        out = bn_relu_maxpool(z, scale, shift)          # fused BN3+ReLU+pool
    else:
        out = bn_relu(z, scale, shift)
    out = out[..., :out_c]                              # drop channel padding
    return jnp.transpose(out, (0, 3, 1, 2))             # NHWC -> NCHW


# --------------------------------------------------------------------------
# Pure-JAX reference (for correctness check only).
# --------------------------------------------------------------------------
def encode_b_reference(params, x_nchw, *, dilation=1, grid=(1, 1, 1),
                       is_downsample=True, eps=1e-5):
    h = x_nchw.astype(jnp.float32)
    for blk, (w, b, g, bt) in enumerate(params):
        dil = dilation * grid[blk]
        w_oihw = jnp.transpose(w, (3, 2, 0, 1))
        h = jax.lax.conv_general_dilated(
            h, w_oihw, window_strides=(1, 1),
            padding=[(dil, dil), (dil, dil)], rhs_dilation=(dil, dil),
            dimension_numbers=("NCHW", "OIHW", "NCHW"))
        h = h + b[None, :, None, None]
        mean = jnp.mean(h, axis=(0, 2, 3), keepdims=True)
        var = jnp.mean((h - mean) ** 2, axis=(0, 2, 3), keepdims=True)
        h = (h - mean) / jnp.sqrt(var + eps)
        h = h * g[None, :, None, None] + bt[None, :, None, None]
        h = jnp.maximum(h, 0.0)
    if is_downsample:
        h = jax.lax.reduce_window(h, -jnp.inf, jax.lax.max,
                                  (1, 1, 2, 2), (1, 1, 2, 2), "VALID")
    return h


if __name__ == "__main__":
    key = jax.random.PRNGKey(0)
    kx, kp = jax.random.split(key)

    in_c, out_c = 4, 8
    x = jax.random.normal(kx, (2, in_c, 16, 16), jnp.float32)   # NCHW input
    params = init_encode_b_params(kp, in_c, out_c)

    out = encode_b_forward(params, x, dilation=1, grid=(1, 1, 1),
                           is_downsample=True)
    out = jax.block_until_ready(out)

    ref = encode_b_reference(params, x)
    assert out.shape == ref.shape == (2, out_c, 8, 8), (out.shape, ref.shape)
    err = float(jnp.max(jnp.abs(out - ref)))
    assert jnp.allclose(out, ref, atol=2e-3, rtol=2e-3), err

    print("KERNEL_OK")
</pallas_src>

<mosaic_0001>
module attributes {stable_mosaic.version = 11 : i64} {
  func.func @_conv_bn_stats_kernel(%arg0: i32, %arg1: i32, %arg2: memref<16x16x128xf32, #tpu.memory_space<vmem>>, %arg3: memref<1152x128xf32, #tpu.memory_space<vmem>>, %arg4: memref<1x128xf32, #tpu.memory_space<vmem>>, %arg5: memref<1x128xf32, #tpu.memory_space<vmem>>, %arg6: memref<1x128xf32, #tpu.memory_space<vmem>>, %arg7: memref<1x8x16x128xf32, #tpu.memory_space<vmem>>, %arg8: memref<1x2x128xf32, #tpu.memory_space<vmem>>, %arg9: memref<10x18x128xf32, #tpu.memory_space<vmem>>) attributes {dimension_semantics = [#tpu.dimension_semantics<parallel>, #tpu.dimension_semantics<arbitrary>], iteration_bounds = array<i64: 2, 2>, scalar_prefetch = 0 : i64, scratch_operands = 1 : i64, tpu.core_type = #tpu.core_type<tc>, window_params = [{transform_indices = @transform_0, window_bounds = array<i64: 16, 16, 128>}, {pipeline_mode = #tpu.pipeline_mode<synchronous>, transform_indices = @transform_1, window_bounds = array<i64: 1152, 128>}, {pipeline_mode = #tpu.pipeline_mode<synchronous>, transform_indices = @transform_2, window_bounds = array<i64: 1, 128>}, {pipeline_mode = #tpu.pipeline_mode<synchronous>, transform_indices = @transform_3, window_bounds = array<i64: 1, 128>}, {pipeline_mode = #tpu.pipeline_mode<synchronous>, transform_indices = @transform_4, window_bounds = array<i64: 1, 128>}, {transform_indices = @transform_5, window_bounds = array<i64: 1, 8, 16, 128>}, {transform_indices = @transform_6, window_bounds = array<i64: 1, 2, 128>}]} {
    %c0 = arith.constant 0 : index
    %c0_0 = arith.constant 0 : index
    %0 = vector.load %arg5[%c0, %c0_0] : memref<1x128xf32, #tpu.memory_space<vmem>>, vector<1x128xf32>
    %1 = vector.shape_cast %0 : vector<1x128xf32> to vector<128xf32>
    %c0_1 = arith.constant 0 : index
    %c0_2 = arith.constant 0 : index
    %2 = vector.load %arg6[%c0_1, %c0_2] : memref<1x128xf32, #tpu.memory_space<vmem>>, vector<1x128xf32>
    %3 = vector.shape_cast %2 : vector<1x128xf32> to vector<128xf32>
    %cst = arith.constant 0.000000e+00 : f32
    %4 = vector.broadcast %cst : f32 to vector<10x18x128xf32>
    %c0_3 = arith.constant 0 : index
    %c0_4 = arith.constant 0 : index
    %c0_5 = arith.constant 0 : index
    %5 = vector.load %arg9[%c0_3, %c0_4, %c0_5] : memref<10x18x128xf32, #tpu.memory_space<vmem>>, vector<10x18x128xf32>
    tpu.vector_store %arg9[%c0_3, %c0_4, %c0_5], %4 {strides = array<i32>} : memref<10x18x128xf32, #tpu.memory_space<vmem>>, vector<10x18x128xf32>,
    %c8_i32 = arith.constant 8 : i32
    %6 = arith.muli %arg1, %c8_i32 : i32
    %c1_i32 = arith.constant 1 : i32
    %7 = arith.subi %6, %c1_i32 : i32
    %c0_i32 = arith.constant 0 : i32
    %8 = arith.addi %7, %c0_i32 : i32
    %c0_i32_6 = arith.constant 0 : i32
    %9 = arith.cmpi sge, %8, %c0_i32_6 : i32
    %c16_i32 = arith.constant 16 : i32
    %10 = arith.cmpi slt, %8, %c16_i32 : i32
    %11 = arith.andi %9, %10 : i1
    %12 = arith.extui %11 : i1 to i32
    %c0_i32_7 = arith.constant 0 : i32
    %13 = arith.cmpi ne, %12, %c0_i32_7 : i32
    scf.if %13 {
      %107 = arith.index_cast %8 : i32 to index
      %c0_81 = arith.constant 0 : index
      %c0_82 = arith.constant 0 : index
      %108 = vector.load %arg2[%107, %c0_81, %c0_82] : memref<16x16x128xf32, #tpu.memory_space<vmem>>, vector<1x16x128xf32>
      %109 = vector.shape_cast %108 : vector<1x16x128xf32> to vector<16x128xf32>
      %110 = vector.shape_cast %1 : vector<128xf32> to vector<1x128xf32>
      %111 = vector.broadcast %110 : vector<1x128xf32> to vector<16x128xf32>
      %112 = arith.mulf %109, %111 : vector<16x128xf32>
      %113 = vector.shape_cast %3 : vector<128xf32> to vector<1x128xf32>
      %114 = vector.broadcast %113 : vector<1x128xf32> to vector<16x128xf32>
      %115 = arith.addf %112, %114 : vector<16x128xf32>
      %c0_83 = arith.constant 0 : index
      %c1_84 = arith.constant 1 : index
      %c0_85 = arith.constant 0 : index
      %116 = vector.load %arg9[%c0_83, %c1_84, %c0_85] : memref<10x18x128xf32, #tpu.memory_space<vmem>>, vector<1x16x128xf32>
      %117 = vector.shape_cast %116 : vector<1x16x128xf32> to vector<16x128xf32>
      %118 = vector.shape_cast %115 : vector<16x128xf32> to vector<1x16x128xf32>
      tpu.vector_store %arg9[%c0_83, %c1_84, %c0_85], %118 {strides = array<i32>} : memref<10x18x128xf32, #tpu.memory_space<vmem>>, vector<1x16x128xf32>,
    } else {
    }
    %c1_i32_8 = arith.constant 1 : i32
    %14 = arith.addi %7, %c1_i32_8 : i32
    %c0_i32_9 = arith.constant 0 : i32
    %15 = arith.cmpi sge, %14, %c0_i32_9 : i32
    %c16_i32_10 = arith.constant 16 : i32
    %16 = arith.cmpi slt, %14, %c16_i32_10 : i32
    %17 = arith.andi %15, %16 : i1
    %18 = arith.extui %17 : i1 to i32
    %c0_i32_11 = arith.constant 0 : i32
    %19 = arith.cmpi ne, %18, %c0_i32_11 : i32
    scf.if %19 {
      %107 = arith.index_cast %14 : i32 to index
      %c0_81 = arith.constant 0 : index
      %c0_82 = arith.constant 0 : index
      %108 = vector.load %arg2[%107, %c0_81, %c0_82] : memref<16x16x128xf32, #tpu.memory_space<vmem>>, vector<1x16x128xf32>
      %109 = vector.shape_cast %108 : vector<1x16x128xf32> to vector<16x128xf32>
      %110 = vector.shape_cast %1 : vector<128xf32> to vector<1x128xf32>
      %111 = vector.broadcast %110 : vector<1x128xf32> to vector<16x128xf32>
      %112 = arith.mulf %109, %111 : vector<16x128xf32>
      %113 = vector.shape_cast %3 : vector<128xf32> to vector<1x128xf32>
      %114 = vector.broadcast %113 : vector<1x128xf32> to vector<16x128xf32>
      %115 = arith.addf %112, %114 : vector<16x128xf32>
      %c1_83 = arith.constant 1 : index
      %c1_84 = arith.constant 1 : index
      %c0_85 = arith.constant 0 : index
      %116 = vector.load %arg9[%c1_83, %c1_84, %c0_85] : memref<10x18x128xf32, #tpu.memory_space<vmem>>, vector<1x16x128xf32>
      %117 = vector.shape_cast %116 : vector<1x16x128xf32> to vector<16x128xf32>
      %118 = vector.shape_cast %115 : vector<16x128xf32> to vector<1x16x128xf32>
      tpu.vector_store %arg9[%c1_83, %c1_84, %c0_85], %118 {strides = array<i32>} : memref<10x18x128xf32, #tpu.memory_space<vmem>>, vector<1x16x128xf32>,
    } else {
    }
    %c2_i32 = arith.constant 2 : i32
    %20 = arith.addi %7, %c2_i32 : i32
    %c0_i32_12 = arith.constant 0 : i32
    %21 = arith.cmpi sge, %20, %c0_i32_12 : i32
    %c16_i32_13 = arith.constant 16 : i32
    %22 = arith.cmpi slt, %20, %c16_i32_13 : i32
    %23 = arith.andi %21, %22 : i1
    %24 = arith.extui %23 : i1 to i32
    %c0_i32_14 = arith.constant 0 : i32
    %25 = arith.cmpi ne, %24, %c0_i32_14 : i32
    scf.if %25 {
      %107 = arith.index_cast %20 : i32 to index
      %c0_81 = arith.constant 0 : index
      %c0_82 = arith.constant 0 : index
      %108 = vector.load %arg2[%107, %c0_81, %c0_82] : memref<16x16x128xf32, #tpu.memory_space<vmem>>, vector<1x16x128xf32>
      %109 = vector.shape_cast %108 : vector<1x16x128xf32> to vector<16x128xf32>
      %110 = vector.shape_cast %1 : vector<128xf32> to vector<1x128xf32>
      %111 = vector.broadcast %110 : vector<1x128xf32> to vector<16x128xf32>
      %112 = arith.mulf %109, %111 : vector<16x128xf32>
      %113 = vector.shape_cast %3 : vector<128xf32> to vector<1x128xf32>
      %114 = vector.broadcast %113 : vector<1x128xf32> to vector<16x128xf32>
      %115 = arith.addf %112, %114 : vector<16x128xf32>
      %c2_83 = arith.constant 2 : index
      %c1_84 = arith.constant 1 : index
      %c0_85 = arith.constant 0 : index
      %116 = vector.load %arg9[%c2_83, %c1_84, %c0_85] : memref<10x18x128xf32, #tpu.memory_space<vmem>>, vector<1x16x128xf32>
      %117 = vector.shape_cast %116 : vector<1x16x128xf32> to vector<16x128xf32>
      %118 = vector.shape_cast %115 : vector<16x128xf32> to vector<1x16x128xf32>
      tpu.vector_store %arg9[%c2_83, %c1_84, %c0_85], %118 {strides = array<i32>} : memref<10x18x128xf32, #tpu.memory_space<vmem>>, vector<1x16x128xf32>,
    } else {
    }
    %c3_i32 = arith.constant 3 : i32
    %26 = arith.addi %7, %c3_i32 : i32
    %c0_i32_15 = arith.constant 0 : i32
    %27 = arith.cmpi sge, %26, %c0_i32_15 : i32
    %c16_i32_16 = arith.constant 16 : i32
    %28 = arith.cmpi slt, %26, %c16_i32_16 : i32
    %29 = arith.andi %27, %28 : i1
    %30 = arith.extui %29 : i1 to i32
    %c0_i32_17 = arith.constant 0 : i32
    %31 = arith.cmpi ne, %30, %c0_i32_17 : i32
    scf.if %31 {
      %107 = arith.index_cast %26 : i32 to index
      %c0_81 = arith.constant 0 : index
      %c0_82 = arith.constant 0 : index
      %108 = vector.load %arg2[%107, %c0_81, %c0_82] : memref<16x16x128xf32, #tpu.memory_space<vmem>>, vector<1x16x128xf32>
      %109 = vector.shape_cast %108 : vector<1x16x128xf32> to vector<16x128xf32>
      %110 = vector.shape_cast %1 : vector<128xf32> to vector<1x128xf32>
      %111 = vector.broadcast %110 : vector<1x128xf32> to vector<16x128xf32>
      %112 = arith.mulf %109, %111 : vector<16x128xf32>
      %113 = vector.shape_cast %3 : vector<128xf32> to vector<1x128xf32>
      %114 = vector.broadcast %113 : vector<1x128xf32> to vector<16x128xf32>
      %115 = arith.addf %112, %114 : vector<16x128xf32>
      %c3 = arith.constant 3 : index
      %c1_83 = arith.constant 1 : index
      %c0_84 = arith.constant 0 : index
      %116 = vector.load %arg9[%c3, %c1_83, %c0_84] : memref<10x18x128xf32, #tpu.memory_space<vmem>>, vector<1x16x128xf32>
      %117 = vector.shape_cast %116 : vector<1x16x128xf32> to vector<16x128xf32>
      %118 = vector.shape_cast %115 : vector<16x128xf32> to vector<1x16x128xf32>
      tpu.vector_store %arg9[%c3, %c1_83, %c0_84], %118 {strides = array<i32>} : memref<10x18x128xf32, #tpu.memory_space<vmem>>, vector<1x16x128xf32>,
    } else {
    }
    %c4_i32 = arith.constant 4 : i32
    %32 = arith.addi %7, %c4_i32 : i32
    %c0_i32_18 = arith.constant 0 : i32
    %33 = arith.cmpi sge, %32, %c0_i32_18 : i32
    %c16_i32_19 = arith.constant 16 : i32
    %34 = arith.cmpi slt, %32, %c16_i32_19 : i32
    %35 = arith.andi %33, %34 : i1
    %36 = arith.extui %35 : i1 to i32
    %c0_i32_20 = arith.constant 0 : i32
    %37 = arith.cmpi ne, %36, %c0_i32_20 : i32
    scf.if %37 {
      %107 = arith.index_cast %32 : i32 to index
      %c0_81 = arith.constant 0 : index
      %c0_82 = arith.constant 0 : index
      %108 = vector.load %arg2[%107, %c0_81, %c0_82] : memref<16x16x128xf32, #tpu.memory_space<vmem>>, vector<1x16x128xf32>
      %109 = vector.shape_cast %108 : vector<1x16x128xf32> to vector<16x128xf32>
      %110 = vector.shape_cast %1 : vector<128xf32> to vector<1x128xf32>
      %111 = vector.broadcast %110 : vector<1x128xf32> to vector<16x128xf32>
      %112 = arith.mulf %109, %111 : vector<16x128xf32>
      %113 = vector.shape_cast %3 : vector<128xf32> to vector<1x128xf32>
      %114 = vector.broadcast %113 : vector<1x128xf32> to vector<16x128xf32>
      %115 = arith.addf %112, %114 : vector<16x128xf32>
      %c4 = arith.constant 4 : index
      %c1_83 = arith.constant 1 : index
      %c0_84 = arith.constant 0 : index
      %116 = vector.load %arg9[%c4, %c1_83, %c0_84] : memref<10x18x128xf32, #tpu.memory_space<vmem>>, vector<1x16x128xf32>
      %117 = vector.shape_cast %116 : vector<1x16x128xf32> to vector<16x128xf32>
      %118 = vector.shape_cast %115 : vector<16x128xf32> to vector<1x16x128xf32>
      tpu.vector_store %arg9[%c4, %c1_83, %c0_84], %118 {strides = array<i32>} : memref<10x18x128xf32, #tpu.memory_space<vmem>>, vector<1x16x128xf32>,
    } else {
    }
    %c5_i32 = arith.constant 5 : i32
    %38 = arith.addi %7, %c5_i32 : i32
    %c0_i32_21 = arith.constant 0 : i32
    %39 = arith.cmpi sge, %38, %c0_i32_21 : i32
    %c16_i32_22 = arith.constant 16 : i32
    %40 = arith.cmpi slt, %38, %c16_i32_22 : i32
    %41 = arith.andi %39, %40 : i1
    %42 = arith.extui %41 : i1 to i32
    %c0_i32_23 = arith.constant 0 : i32
    %43 = arith.cmpi ne, %42, %c0_i32_23 : i32
    scf.if %43 {
      %107 = arith.index_cast %38 : i32 to index
      %c0_81 = arith.constant 0 : index
      %c0_82 = arith.constant 0 : index
      %108 = vector.load %arg2[%107, %c0_81, %c0_82] : memref<16x16x128xf32, #tpu.memory_space<vmem>>, vector<1x16x128xf32>
      %109 = vector.shape_cast %108 : vector<1x16x128xf32> to vector<16x128xf32>
      %110 = vector.shape_cast %1 : vector<128xf32> to vector<1x128xf32>
      %111 = vector.broadcast %110 : vector<1x128xf32> to vector<16x128xf32>
      %112 = arith.mulf %109, %111 : vector<16x128xf32>
      %113 = vector.shape_cast %3 : vector<128xf32> to vector<1x128xf32>
      %114 = vector.broadcast %113 : vector<1x128xf32> to vector<16x128xf32>
      %115 = arith.addf %112, %114 : vector<16x128xf32>
      %c5 = arith.constant 5 : index
      %c1_83 = arith.constant 1 : index
      %c0_84 = arith.constant 0 : index
      %116 = vector.load %arg9[%c5, %c1_83, %c0_84] : memref<10x18x128xf32, #tpu.memory_space<vmem>>, vector<1x16x128xf32>
      %117 = vector.shape_cast %116 : vector<1x16x128xf32> to vector<16x128xf32>
      %118 = vector.shape_cast %115 : vector<16x128xf32> to vector<1x16x128xf32>
      tpu.vector_store %arg9[%c5, %c1_83, %c0_84], %118 {strides = array<i32>} : memref<10x18x128xf32, #tpu.memory_space<vmem>>, vector<1x16x128xf32>,
    } else {
    }
    %c6_i32 = arith.constant 6 : i32
    %44 = arith.addi %7, %c6_i32 : i32
    %c0_i32_24 = arith.constant 0 : i32
    %45 = arith.cmpi sge, %44, %c0_i32_24 : i32
    %c16_i32_25 = arith.constant 16 : i32
    %46 = arith.cmpi slt, %44, %c16_i32_25 : i32
    %47 = arith.andi %45, %46 : i1
    %48 = arith.extui %47 : i1 to i32
    %c0_i32_26 = arith.constant 0 : i32
    %49 = arith.cmpi ne, %48, %c0_i32_26 : i32
    scf.if %49 {
      %107 = arith.index_cast %44 : i32 to index
      %c0_81 = arith.constant 0 : index
      %c0_82 = arith.constant 0 : index
      %108 = vector.load %arg2[%107, %c0_81, %c0_82] : memref<16x16x128xf32, #tpu.memory_space<vmem>>, vector<1x16x128xf32>
      %109 = vector.shape_cast %108 : vector<1x16x128xf32> to vector<16x128xf32>
      %110 = vector.shape_cast %1 : vector<128xf32> to vector<1x128xf32>
      %111 = vector.broadcast %110 : vector<1x128xf32> to vector<16x128xf32>
      %112 = arith.mulf %109, %111 : vector<16x128xf32>
      %113 = vector.shape_cast %3 : vector<128xf32> to vector<1x128xf32>
      %114 = vector.broadcast %113 : vector<1x128xf32> to vector<16x128xf32>
      %115 = arith.addf %112, %114 : vector<16x128xf32>
      %c6 = arith.constant 6 : index
      %c1_83 = arith.constant 1 : index
      %c0_84 = arith.constant 0 : index
      %116 = vector.load %arg9[%c6, %c1_83, %c0_84] : memref<10x18x128xf32, #tpu.memory_space<vmem>>, vector<1x16x128xf32>
      %117 = vector.shape_cast %116 : vector<1x16x128xf32> to vector<16x128xf32>
      %118 = vector.shape_cast %115 : vector<16x128xf32> to vector<1x16x128xf32>
      tpu.vector_store %arg9[%c6, %c1_83, %c0_84], %118 {strides = array<i32>} : memref<10x18x128xf32, #tpu.memory_space<vmem>>, vector<1x16x128xf32>,
    } else {
    }
    %c7_i32 = arith.constant 7 : i32
    %50 = arith.addi %7, %c7_i32 : i32
    %c0_i32_27 = arith.constant 0 : i32
    %51 = arith.cmpi sge, %50, %c0_i32_27 : i32
    %c16_i32_28 = arith.constant 16 : i32
    %52 = arith.cmpi slt, %50, %c16_i32_28 : i32
    %53 = arith.andi %51, %52 : i1
    %54 = arith.extui %53 : i1 to i32
    %c0_i32_29 = arith.constant 0 : i32
    %55 = arith.cmpi ne, %54, %c0_i32_29 : i32
    scf.if %55 {
      %107 = arith.index_cast %50 : i32 to index
      %c0_81 = arith.constant 0 : index
      %c0_82 = arith.constant 0 : index
      %108 = vector.load %arg2[%107, %c0_81, %c0_82] : memref<16x16x128xf32, #tpu.memory_space<vmem>>, vector<1x16x128xf32>
      %109 = vector.shape_cast %108 : vector<1x16x128xf32> to vector<16x128xf32>
      %110 = vector.shape_cast %1 : vector<128xf32> to vector<1x128xf32>
      %111 = vector.broadcast %110 : vector<1x128xf32> to vector<16x128xf32>
      %112 = arith.mulf %109, %111 : vector<16x128xf32>
      %113 = vector.shape_cast %3 : vector<128xf32> to vector<1x128xf32>
      %114 = vector.broadcast %113 : vector<1x128xf32> to vector<16x128xf32>
      %115 = arith.addf %112, %114 : vector<16x128xf32>
      %c7 = arith.constant 7 : index
      %c1_83 = arith.constant 1 : index
      %c0_84 = arith.constant 0 : index
      %116 = vector.load %arg9[%c7, %c1_83, %c0_84] : memref<10x18x128xf32, #tpu.memory_space<vmem>>, vector<1x16x128xf32>
      %117 = vector.shape_cast %116 : vector<1x16x128xf32> to vector<16x128xf32>
      %118 = vector.shape_cast %115 : vector<16x128xf32> to vector<1x16x128xf32>
      tpu.vector_store %arg9[%c7, %c1_83, %c0_84], %118 {strides = array<i32>} : memref<10x18x128xf32, #tpu.memory_space<vmem>>, vector<1x16x128xf32>,
    } else {
    }
    %c8_i32_30 = arith.constant 8 : i32
    %56 = arith.addi %7, %c8_i32_30 : i32
    %c0_i32_31 = arith.constant 0 : i32
    %57 = arith.cmpi sge, %56, %c0_i32_31 : i32
    %c16_i32_32 = arith.constant 16 : i32
    %58 = arith.cmpi slt, %56, %c16_i32_32 : i32
    %59 = arith.andi %57, %58 : i1
    %60 = arith.extui %59 : i1 to i32
    %c0_i32_33 = arith.constant 0 : i32
    %61 = arith.cmpi ne, %60, %c0_i32_33 : i32
    scf.if %61 {
      %107 = arith.index_cast %56 : i32 to index
      %c0_81 = arith.constant 0 : index
      %c0_82 = arith.constant 0 : index
      %108 = vector.load %arg2[%107, %c0_81, %c0_82] : memref<16x16x128xf32, #tpu.memory_space<vmem>>, vector<1x16x128xf32>
      %109 = vector.shape_cast %108 : vector<1x16x128xf32> to vector<16x128xf32>
      %110 = vector.shape_cast %1 : vector<128xf32> to vector<1x128xf32>
      %111 = vector.broadcast %110 : vector<1x128xf32> to vector<16x128xf32>
      %112 = arith.mulf %109, %111 : vector<16x128xf32>
      %113 = vector.shape_cast %3 : vector<128xf32> to vector<1x128xf32>
      %114 = vector.broadcast %113 : vector<1x128xf32> to vector<16x128xf32>
      %115 = arith.addf %112, %114 : vector<16x128xf32>
      %c8 = arith.constant 8 : index
      %c1_83 = arith.constant 1 : index
      %c0_84 = arith.constant 0 : index
      %116 = vector.load %arg9[%c8, %c1_83, %c0_84] : memref<10x18x128xf32, #tpu.memory_space<vmem>>, vector<1x16x128xf32>
      %117 = vector.shape_cast %116 : vector<1x16x128xf32> to vector<16x128xf32>
      %118 = vector.shape_cast %115 : vector<16x128xf32> to vector<1x16x128xf32>
      tpu.vector_store %arg9[%c8, %c1_83, %c0_84], %118 {strides = array<i32>} : memref<10x18x128xf32, #tpu.memory_space<vmem>>, vector<1x16x128xf32>,
    } else {
    }
    %c9_i32 = arith.constant 9 : i32
    %62 = arith.addi %7, %c9_i32 : i32
    %c0_i32_34 = arith.constant 0 : i32
    %63 = arith.cmpi sge, %62, %c0_i32_34 : i32
    %c16_i32_35 = arith.constant 16 : i32
    %64 = arith.cmpi slt, %62, %c16_i32_35 : i32
    %65 = arith.andi %63, %64 : i1
    %66 = arith.extui %65 : i1 to i32
    %c0_i32_36 = arith.constant 0 : i32
    %67 = arith.cmpi ne, %66, %c0_i32_36 : i32
    scf.if %67 {
      %107 = arith.index_cast %62 : i32 to index
      %c0_81 = arith.constant 0 : index
      %c0_82 = arith.constant 0 : index
      %108 = vector.load %arg2[%107, %c0_81, %c0_82] : memref<16x16x128xf32, #tpu.memory_space<vmem>>, vector<1x16x128xf32>
      %109 = vector.shape_cast %108 : vector<1x16x128xf32> to vector<16x128xf32>
      %110 = vector.shape_cast %1 : vector<128xf32> to vector<1x128xf32>
      %111 = vector.broadcast %110 : vector<1x128xf32> to vector<16x128xf32>
      %112 = arith.mulf %109, %111 : vector<16x128xf32>
      %113 = vector.shape_cast %3 : vector<128xf32> to vector<1x128xf32>
      %114 = vector.broadcast %113 : vector<1x128xf32> to vector<16x128xf32>
      %115 = arith.addf %112, %114 : vector<16x128xf32>
      %c9 = arith.constant 9 : index
      %c1_83 = arith.constant 1 : index
      %c0_84 = arith.constant 0 : index
      %116 = vector.load %arg9[%c9, %c1_83, %c0_84] : memref<10x18x128xf32, #tpu.memory_space<vmem>>, vector<1x16x128xf32>
      %117 = vector.shape_cast %116 : vector<1x16x128xf32> to vector<16x128xf32>
      %118 = vector.shape_cast %115 : vector<16x128xf32> to vector<1x16x128xf32>
      tpu.vector_store %arg9[%c9, %c1_83, %c0_84], %118 {strides = array<i32>} : memref<10x18x128xf32, #tpu.memory_space<vmem>>, vector<1x16x128xf32>,
    } else {
    }
    %c0_37 = arith.constant 0 : index
    %c0_38 = arith.constant 0 : index
    %c0_39 = arith.constant 0 : index
    %68 = vector.load %arg9[%c0_37, %c0_38, %c0_39] : memref<10x18x128xf32, #tpu.memory_space<vmem>>, vector<8x16x128xf32>
    %69 = vector.shape_cast %68 : vector<8x16x128xf32> to vector<128x128xf32>
    %c0_40 = arith.constant 0 : index
    %c1 = arith.constant 1 : index
    %c0_41 = arith.constant 0 : index
    %70 = vector.load %arg9[%c0_40, %c1, %c0_41] : memref<10x18x128xf32, #tpu.memory_space<vmem>>, vector<8x16x128xf32>
    %71 = vector.shape_cast %70 : vector<8x16x128xf32> to vector<128x128xf32>
    %c0_42 = arith.constant 0 : index
    %c2 = arith.constant 2 : index
    %c0_43 = arith.constant 0 : index
    %72 = vector.load %arg9[%c0_42, %c2, %c0_43] : memref<10x18x128xf32, #tpu.memory_space<vmem>>, vector<8x16x128xf32>
    %73 = vector.shape_cast %72 : vector<8x16x128xf32> to vector<128x128xf32>
    %c1_44 = arith.constant 1 : index
    %c0_45 = arith.constant 0 : index
    %c0_46 = arith.constant 0 : index
    %74 = vector.load %arg9[%c1_44, %c0_45, %c0_46] : memref<10x18x128xf32, #tpu.memory_space<vmem>>, vector<8x16x128xf32>
    %75 = vector.shape_cast %74 : vector<8x16x128xf32> to vector<128x128xf32>
    %c1_47 = arith.constant 1 : index
    %c1_48 = arith.constant 1 : index
    %c0_49 = arith.constant 0 : index
    %76 = vector.load %arg9[%c1_47, %c1_48, %c0_49] : memref<10x18x128xf32, #tpu.memory_space<vmem>>, vector<8x16x128xf32>
    %77 = vector.shape_cast %76 : vector<8x16x128xf32> to vector<128x128xf32>
    %c1_50 = arith.constant 1 : index
    %c2_51 = arith.constant 2 : index
    %c0_52 = arith.constant 0 : index
    %78 = vector.load %arg9[%c1_50, %c2_51, %c0_52] : memref<10x18x128xf32, #tpu.memory_space<vmem>>, vector<8x16x128xf32>
    %79 = vector.shape_cast %78 : vector<8x16x128xf32> to vector<128x128xf32>
    %c2_53 = arith.constant 2 : index
    %c0_54 = arith.constant 0 : index
    %c0_55 = arith.constant 0 : index
    %80 = vector.load %arg9[%c2_53, %c0_54, %c0_55] : memref<10x18x128xf32, #tpu.memory_space<vmem>>, vector<8x16x128xf32>
    %81 = vector.shape_cast %80 : vector<8x16x128xf32> to vector<128x128xf32>
    %c2_56 = arith.constant 2 : index
    %c1_57 = arith.constant 1 : index
    %c0_58 = arith.constant 0 : index
    %82 = vector.load %arg9[%c2_56, %c1_57, %c0_58] : memref<10x18x128xf32, #tpu.memory_space<vmem>>, vector<8x16x128xf32>
    %83 = vector.shape_cast %82 : vector<8x16x128xf32> to vector<128x128xf32>
    %c2_59 = arith.constant 2 : index
    %c2_60 = arith.constant 2 : index
    %c0_61 = arith.constant 0 : index
    %84 = vector.load %arg9[%c2_59, %c2_60, %c0_61] : memref<10x18x128xf32, #tpu.memory_space<vmem>>, vector<8x16x128xf32>
    %85 = vector.shape_cast %84 : vector<8x16x128xf32> to vector<128x128xf32>
    %86 = tpu.concatenate %69, %71, %73, %75, %77, %79, %81, %83, %85 in 1 : vector<128x128xf32>, vector<128x128xf32>, vector<128x128xf32>, vector<128x128xf32>, vector<128x128xf32>, vector<128x128xf32>, vector<128x128xf32>, vector<128x128xf32>, vector<128x128xf32> -> vector<128x1152xf32>
    %c0_62 = arith.constant 0 : index
    %c0_63 = arith.constant 0 : index
    %87 = vector.load %arg3[%c0_62, %c0_63] : memref<1152x128xf32, #tpu.memory_space<vmem>>, vector<1152x128xf32>
    %cst_64 = arith.constant dense<0.000000e+00> : vector<128x128xf32>
    %88 = tpu.matmul %86, %87, %cst_64 {dimension_numbers = #tpu.dot_dimension_numbers<[1], [0], [0], [1], [0, 0, 1, 1], [], []>} : vector<128x1152xf32>, vector<1152x128xf32>, vector<128x128xf32> -> vector<128x128xf32>
    %c0_65 = arith.constant 0 : index
    %c0_66 = arith.constant 0 : index
    %89 = vector.load %arg4[%c0_65, %c0_66] : memref<1x128xf32, #tpu.memory_space<vmem>>, vector<1x128xf32>
    %90 = vector.broadcast %89 : vector<1x128xf32> to vector<128x128xf32>
    %91 = arith.addf %88, %90 : vector<128x128xf32>
    %92 = vector.shape_cast %91 : vector<128x128xf32> to vector<1x8x16x128xf32>
    %c0_67 = arith.constant 0 : index
    %c0_68 = arith.constant 0 : index
    %c0_69 = arith.constant 0 : index
    %c0_70 = arith.constant 0 : index
    %93 = vector.load %arg7[%c0_67, %c0_68, %c0_69, %c0_70] : memref<1x8x16x128xf32, #tpu.memory_space<vmem>>, vector<1x8x16x128xf32>
    tpu.vector_store %arg7[%c0_67, %c0_68, %c0_69, %c0_70], %92 {strides = array<i32>} : memref<1x8x16x128xf32, #tpu.memory_space<vmem>>, vector<1x8x16x128xf32>,
    %c0_i32_71 = arith.constant 0 : i32
    %94 = arith.cmpi eq, %arg1, %c0_i32_71 : i32
    %95 = arith.extui %94 : i1 to i32
    %c0_i32_72 = arith.constant 0 : i32
    %96 = arith.cmpi ne, %95, %c0_i32_72 : i32
    scf.if %96 {
      %cst_81 = arith.constant 0.000000e+00 : f32
      %107 = vector.broadcast %cst_81 : f32 to vector<1x2x128xf32>
      %c0_82 = arith.constant 0 : index
      %c0_83 = arith.constant 0 : index
      %c0_84 = arith.constant 0 : index
      %108 = vector.load %arg8[%c0_82, %c0_83, %c0_84] : memref<1x2x128xf32, #tpu.memory_space<vmem>>, vector<1x2x128xf32>
      tpu.vector_store %arg8[%c0_82, %c0_83, %c0_84], %107 {strides = array<i32>} : memref<1x2x128xf32, #tpu.memory_space<vmem>>, vector<1x2x128xf32>,
    } else {
    }
    %cst_73 = arith.constant dense<0.000000e+00> : vector<128xf32>
    %97 = vector.multi_reduction <add>, %91, %cst_73 [0] : vector<128x128xf32> to vector<128xf32>
    %98 = vector.shape_cast %97 : vector<128xf32> to vector<1x128xf32>
    %99 = arith.mulf %91, %91 : vector<128x128xf32>
    %cst_74 = arith.constant dense<0.000000e+00> : vector<128xf32>
    %100 = vector.multi_reduction <add>, %99, %cst_74 [0] : vector<128x128xf32> to vector<128xf32>
    %101 = vector.shape_cast %100 : vector<128xf32> to vector<1x128xf32>
    %c0_75 = arith.constant 0 : index
    %c0_76 = arith.constant 0 : index
    %c0_77 = arith.constant 0 : index
    %102 = vector.load %arg8[%c0_75, %c0_76, %c0_77] : memref<1x2x128xf32, #tpu.memory_space<vmem>>, vector<1x2x128xf32>
    %103 = tpu.concatenate %98, %101 in 0 : vector<1x128xf32>, vector<1x128xf32> -> vector<2x128xf32>
    %104 = vector.shape_cast %103 : vector<2x128xf32> to vector<1x2x128xf32>
    %105 = arith.addf %102, %104 : vector<1x2x128xf32>
    %c0_78 = arith.constant 0 : index
    %c0_79 = arith.constant 0 : index
    %c0_80 = arith.constant 0 : index
    %106 = vector.load %arg8[%c0_78, %c0_79, %c0_80] : memref<1x2x128xf32, #tpu.memory_space<vmem>>, vector<1x2x128xf32>
    tpu.vector_store %arg8[%c0_78, %c0_79, %c0_80], %105 {strides = array<i32>} : memref<1x2x128xf32, #tpu.memory_space<vmem>>, vector<1x2x128xf32>,
    return
  }
  func.func @transform_0(%arg0: i32, %arg1: i32) -> (i32, i32, i32) {
    %c0_i32 = arith.constant 0 : i32
    %c0_i32_0 = arith.constant 0 : i32
    %c0_i32_1 = arith.constant 0 : i32
    return %arg0, %c0_i32, %c0_i32_0 : i32, i32, i32
  }
  func.func @transform_1(%arg0: i32, %arg1: i32) -> (i32, i32) {
    %c0_i32 = arith.constant 0 : i32
    %c0_i32_0 = arith.constant 0 : i32
    %c0_i32_1 = arith.constant 0 : i32
    return %c0_i32, %c0_i32_0 : i32, i32
  }
  func.func @transform_2(%arg0: i32, %arg1: i32) -> (i32, i32) {
    %c0_i32 = arith.constant 0 : i32
    %c0_i32_0 = arith.constant 0 : i32
    %c0_i32_1 = arith.constant 0 : i32
    return %c0_i32, %c0_i32_0 : i32, i32
  }
  func.func @transform_3(%arg0: i32, %arg1: i32) -> (i32, i32) {
    %c0_i32 = arith.constant 0 : i32
    %c0_i32_0 = arith.constant 0 : i32
    %c0_i32_1 = arith.constant 0 : i32
    return %c0_i32, %c0_i32_0 : i32, i32
  }
  func.func @transform_4(%arg0: i32, %arg1: i32) -> (i32, i32) {
    %c0_i32 = arith.constant 0 : i32
    %c0_i32_0 = arith.constant 0 : i32
    %c0_i32_1 = arith.constant 0 : i32
    return %c0_i32, %c0_i32_0 : i32, i32
  }
  func.func @transform_5(%arg0: i32, %arg1: i32) -> (i32, i32, i32, i32) {
    %c0_i32 = arith.constant 0 : i32
    %c0_i32_0 = arith.constant 0 : i32
    %c0_i32_1 = arith.constant 0 : i32
    return %arg0, %arg1, %c0_i32, %c0_i32_0 : i32, i32, i32, i32
  }
  func.func @transform_6(%arg0: i32, %arg1: i32) -> (i32, i32, i32) {
    %c0_i32 = arith.constant 0 : i32
    %c0_i32_0 = arith.constant 0 : i32
    %c0_i32_1 = arith.constant 0 : i32
    return %arg0, %c0_i32, %c0_i32_0 : i32, i32, i32
  }
}

</mosaic_0001>

<llo_original>
// kernel: tpu_custom_call.1
$region0: #{tpu_custom_call.1}
  #allocation0 [shape = 'u32[]', space=smem, size = 0x4, offset = 0x4, fixed_abs, tag = 'smem constant byte address 0x4 - core index']
  #allocation1 [shape = 'u32[72,128]{1,0:T(1,128)}', space=vmem, size = 0x9000, scoped, tag = 'internal scratch']
  #allocation2 [shape = 'f32[10,18,128]{2,1,0:T(8,128)}', space=vmem, size = 0x1e000, scoped, tag = 'scratch operand']
  %s0 = inlined_call_operand.hbm [shape: f32[32,16,128], index: 0, kind: input, shape index: {}]
  %s1 = inlined_call_operand.hbm [shape: f32[1152,128], index: 1, kind: input, shape index: {}]
  %s2 = inlined_call_operand.vmem [shape: f32[1,128], index: 2, kind: input, shape index: {}]
  %s3 = inlined_call_operand.vmem [shape: f32[1,128], index: 3, kind: input, shape index: {}]
  %s4 = inlined_call_operand.vmem [shape: f32[1,128], index: 4, kind: input, shape index: {}]
  %s5 = inlined_call_operand.hbm [shape: f32[2,16,16,128], index: 5, kind: output, shape index: {0}]
  %s6 = inlined_call_operand.hbm [shape: f32[2,2,128], index: 6, kind: output, shape index: {1}]
  %7 = xla_tuple %s5, %s6
  %s8 = sld [smem:[#allocation0]]
  $region113: #{tpu_custom_call.1} parent=0
    _
  %s10 = ssub.s32 1, %s8
  %s11 = scalar_select 0, %s10, %s8
  $region1: #{tpu_custom_call.1} parent=0
    #allocation3 [shape = 'u8[262144]{0}', space=vmem, size = 0x40000, scoped, tag = 'input window, operand 0']
    #allocation4 [shape = 's32[2]{0}', space=sflag, size = 0x8, scoped, tag = 'scoped memory for tpu_custom_call.1']
    #allocation5 [shape = 's32[2]{0}', space=sflag, size = 0x8, scoped, tag = 'scoped memory for tpu_custom_call.1']
    #allocation6 [shape = 'u8[589824]{0}', space=vmem, size = 0x90000, scoped, tag = 'input window, operand 1, single buffered']
    #allocation7 [shape = 's32[1]{0}', space=sflag, size = 0x4, scoped, tag = 'scoped memory for tpu_custom_call.1']
    #allocation8 [shape = 'u8[131072]{0}', space=vmem, size = 0x20000, scoped, tag = 'output window, operand 0']
    #allocation9 [shape = 'u8[2048]{0}', space=vmem, size = 0x800, scoped, tag = 'output window, operand 1']
    #allocation10 [shape = 's32[2]{0}', space=sflag, size = 0x8, scoped, tag = 'scoped memory for tpu_custom_call.1']
    %12 = vsyncpa [#allocation4], 0
    %s13 = scalar_lea.sflag [#allocation4], 1
    %14 = vsyncpa %s13, 0
    %15 = vsyncpa [#allocation7], 0
    %16 = vsyncpa [#allocation5], 0
    %s17 = scalar_lea.sflag [#allocation5], 1
    %18 = vsyncpa %s17, 0
    %19 = vsyncpa [#allocation10], 0
    %s20 = scalar_lea.sflag [#allocation10], 1
    %21 = vsyncpa %s20, 0
    loop: start=0, step=1, limit=6
    $region2: #{tpu_custom_call.1} parent=1 // loop_pre_header
      _
    $region3: #{tpu_custom_call.1} parent=1 // loop_header
      %s23 = sphi 0, %s27
      %p24 = scmp.ge.s32.totalorder %s23, 6
      %s30 = sphi 0, %s42
      %s31 = sphi 0, %s38
      %s32 = sphi 0, %s30
      %s33 = sphi 0, %s31
      %s34 = sphi 0, %s32
      %s35 = sphi 0, %s33
      %s45 = sphi 0, %s47
      %s48 = sphi 0, %s45
      %s49 = sphi 0, %s48
      %s65 = sphi 0, %s49
      %s69 = sphi 0, %s69
      %s71 = sphi 0, %s69
      %s72 = sphi 0, %s71
      %s86 = sphi 0, %s72
      %s90 = sphi 0, %s90
      %s92 = sphi 0, %s90
      %s93 = sphi 0, %s92
      %s107 = sphi 0, %s93
      %s111 = sphi 0, %s111
      %s113 = sphi 0, %s111
      %s114 = sphi 0, %s113
      %s128 = sphi 0, %s114
      %s132 = sphi 0, %s132
      %s134 = sphi 0, %s132
      %s135 = sphi 0, %s134
      %s149 = sphi 0, %s135
      %s157 = sphi 0, %s159
      %s160 = sphi 0, %s157
      %s161 = sphi 0, %s160
      %s177 = sphi 0, %s161
      %s183 = sphi 0, %s185
      %s186 = sphi 0, %s183
      %s187 = sphi 0, %s186
      %s203 = sphi 0, %s187
    $region4: #{tpu_custom_call.1} parent=1 // loop_header_branch
      %26 = sbr.rel (%p24) target = $region8
    $region5: #{tpu_custom_call.1} parent=1 // loop_body
      %s28 = ssub.s32 %s23, 1
      %s29 = ssub.s32 %s23, 2
      %s36 = sadd.s32 1, %s31
      %p37 = scmp.ge.s32.totalorder %s36, 2
      %s38 = scalar_select %p37, 0, %s36
      %s39 = sadd.s32 1, %s30
      %s40 = scalar_select %p37, %s39, %s30
      %p41 = scmp.ge.s32.totalorder %s40, 2
      %s42 = scalar_select %p41, 0, %s40
      %s43 = ssub.s32 %s30, %s42
      %p44 = scmp.eq.s32.totalorder %s43, 0
      %s46 = sadd.s32 %s45, 1
      %s47 = scalar_select %p44, %s45, %s46
      %p50 = pneg %p44
      %p51 = scmp.eq.s32.totalorder %s23, 3
      %p52 = por %p50, %p51
      %p53 = scmp.ne.s32.totalorder %s45, %s48
      %p54 = scmp.eq.s32.totalorder %s23, 0
      %p55 = por %p53, %p54
      %p56 = scmp.ne.s32.totalorder %s45, %s48
      %p57 = scmp.eq.s32.totalorder %s28, 3
      %p58 = por %p56, %p57
      %p59 = scmp.ne.s32.totalorder %s48, %s49
      %p60 = scmp.eq.s32.totalorder %s28, 0
      %p61 = por %p59, %p60
      %p62 = scmp.ne.s32.totalorder %s48, %s49
      %p63 = scmp.eq.s32.totalorder %s29, 3
      %p64 = por %p62, %p63
      %p66 = scmp.ne.s32.totalorder %s49, %s65
      %p67 = scmp.eq.s32.totalorder %s29, 0
      %p68 = por %p66, %p67
      %s70 = sadd.s32 %s69, 1
      %p73 = scmp.eq.s32.totalorder %s23, 3
      %p74 = scmp.ne.s32.totalorder %s69, %s71
      %p75 = scmp.eq.s32.totalorder %s23, 0
      %p76 = por %p74, %p75
      %p77 = scmp.ne.s32.totalorder %s69, %s71
      %p78 = scmp.eq.s32.totalorder %s28, 3
      %p79 = por %p77, %p78
      %p80 = scmp.ne.s32.totalorder %s71, %s72
      %p81 = scmp.eq.s32.totalorder %s28, 0
      %p82 = por %p80, %p81
      %p83 = scmp.ne.s32.totalorder %s71, %s72
      %p84 = scmp.eq.s32.totalorder %s29, 3
      %p85 = por %p83, %p84
      %p87 = scmp.ne.s32.totalorder %s72, %s86
      %p88 = scmp.eq.s32.totalorder %s29, 0
      %p89 = por %p87, %p88
      %s91 = sadd.s32 %s90, 1
      %p94 = scmp.eq.s32.totalorder %s23, 3
      %p95 = scmp.ne.s32.totalorder %s90, %s92
      %p96 = scmp.eq.s32.totalorder %s23, 0
      %p97 = por %p95, %p96
      %p98 = scmp.ne.s32.totalorder %s90, %s92
      %p99 = scmp.eq.s32.totalorder %s28, 3
      %p100 = por %p98, %p99
      %p101 = scmp.ne.s32.totalorder %s92, %s93
      %p102 = scmp.eq.s32.totalorder %s28, 0
      %p103 = por %p101, %p102
      %p104 = scmp.ne.s32.totalorder %s92, %s93
      %p105 = scmp.eq.s32.totalorder %s29, 3
      %p106 = por %p104, %p105
      %p108 = scmp.ne.s32.totalorder %s93, %s107
      %p109 = scmp.eq.s32.totalorder %s29, 0
      %p110 = por %p108, %p109
      %s112 = sadd.s32 %s111, 1
      %p115 = scmp.eq.s32.totalorder %s23, 3
      %p116 = scmp.ne.s32.totalorder %s111, %s113
      %p117 = scmp.eq.s32.totalorder %s23, 0
      %p118 = por %p116, %p117
      %p119 = scmp.ne.s32.totalorder %s111, %s113
      %p120 = scmp.eq.s32.totalorder %s28, 3
      %p121 = por %p119, %p120
      %p122 = scmp.ne.s32.totalorder %s113, %s114
      %p123 = scmp.eq.s32.totalorder %s28, 0
      %p124 = por %p122, %p123
      %p125 = scmp.ne.s32.totalorder %s113, %s114
      %p126 = scmp.eq.s32.totalorder %s29, 3
      %p127 = por %p125, %p126
      %p129 = scmp.ne.s32.totalorder %s114, %s128
      %p130 = scmp.eq.s32.totalorder %s29, 0
      %p131 = por %p129, %p130
      %s133 = sadd.s32 %s132, 1
      %p136 = scmp.eq.s32.totalorder %s23, 3
      %p137 = scmp.ne.s32.totalorder %s132, %s134
      %p138 = scmp.eq.s32.totalorder %s23, 0
      %p139 = por %p137, %p138
      %p140 = scmp.ne.s32.totalorder %s132, %s134
      %p141 = scmp.eq.s32.totalorder %s28, 3
      %p142 = por %p140, %p141
      %p143 = scmp.ne.s32.totalorder %s134, %s135
      %p144 = scmp.eq.s32.totalorder %s28, 0
      %p145 = por %p143, %p144
      %p146 = scmp.ne.s32.totalorder %s134, %s135
      %p147 = scmp.eq.s32.totalorder %s29, 3
      %p148 = por %p146, %p147
      %p150 = scmp.ne.s32.totalorder %s135, %s149
      %p151 = scmp.eq.s32.totalorder %s29, 0
      %p152 = por %p150, %p151
      %s153 = ssub.s32 %s30, %s42
      %s154 = ssub.s32 %s31, %s38
      %s155 = sor.u32 %s153, %s154
      %p156 = scmp.eq.s32.totalorder %s155, 0
      %s158 = sadd.s32 %s157, 1
      %s159 = scalar_select %p156, %s157, %s158
      %p162 = pneg %p156
      %p163 = scmp.eq.s32.totalorder %s23, 3
      %p164 = por %p162, %p163
      %p165 = scmp.ne.s32.totalorder %s157, %s160
      %p166 = scmp.eq.s32.totalorder %s23, 0
      %p167 = por %p165, %p166
      %p168 = scmp.ne.s32.totalorder %s157, %s160
      %p169 = scmp.eq.s32.totalorder %s28, 3
      %p170 = por %p168, %p169
      %p171 = scmp.ne.s32.totalorder %s160, %s161
      %p172 = scmp.eq.s32.totalorder %s28, 0
      %p173 = por %p171, %p172
      %p174 = scmp.ne.s32.totalorder %s160, %s161
      %p175 = scmp.eq.s32.totalorder %s29, 3
      %p176 = por %p174, %p175
      %p178 = scmp.ne.s32.totalorder %s161, %s177
      %p179 = scmp.eq.s32.totalorder %s29, 0
      %p180 = por %p178, %p179
      %s181 = ssub.s32 %s30, %s42
      %p182 = scmp.eq.s32.totalorder %s181, 0
      %s184 = sadd.s32 %s183, 1
      %s185 = scalar_select %p182, %s183, %s184
      %p188 = pneg %p182
      %p189 = scmp.eq.s32.totalorder %s23, 3
      %p190 = por %p188, %p189
      %p191 = scmp.ne.s32.totalorder %s183, %s186
      %p192 = scmp.eq.s32.totalorder %s23, 0
      %p193 = por %p191, %p192
      %p194 = scmp.ne.s32.totalorder %s183, %s186
      %p195 = scmp.eq.s32.totalorder %s28, 3
      %p196 = por %p194, %p195
      %p197 = scmp.ne.s32.totalorder %s186, %s187
      %p198 = scmp.eq.s32.totalorder %s28, 0
      %p199 = por %p197, %p198
      %p200 = scmp.ne.s32.totalorder %s186, %s187
      %p201 = scmp.eq.s32.totalorder %s29, 3
      %p202 = por %p200, %p201
      %p204 = scmp.ne.s32.totalorder %s187, %s203
      %p205 = scmp.eq.s32.totalorder %s29, 0
      %p206 = por %p204, %p205
      %p207 = scmp.le.s32.totalorder 1, %s23
      %p208 = scmp.lt.s32.totalorder %s23, 5
      %p209 = pnand %p207, %p208
      %p210 = pneg %p209
      // Predicated region
      $region9: #{tpu_custom_call.1} parent=5 // pred_check
        _
      $region10: #{tpu_custom_call.1} parent=5 // pred_check_branch
        %212 = sbr.rel (%p209) target = $region12
      $region11: #{tpu_custom_call.1} parent=5 // pred_region
        %s213 = ssub.s32 %s23, 1
        // Predicated region
        $region13: #{tpu_custom_call.1} parent=11 // pred_check
          %p214 = pneg %p82
        $region14: #{tpu_custom_call.1} parent=11 // pred_check_branch
          %216 = sbr.rel (%p214) target = $region16
        $region15: #{tpu_custom_call.1} parent=11 // pred_region
          %218 = vsyncadd [#allocation7], 0
          %s219 = sshll.u32 %s1, 4
          %s220 = int_to_ptr.hbm [resolvable:$true] %s219
          %s221 = sshll.u32 [#allocation6], 4
          %s222 = int_to_ptr.vmem [resolvable:$true] %s221
          %227 = dma.hbm_to_vmem [thread:$0]  %s220, 18432, %s222, [#allocation7], 128, 128, 8
        $region16: #{tpu_custom_call.1} parent=11 // pred_fallthru
          _
        // Predicated region
        $region17: #{tpu_custom_call.1} parent=11 // pred_check
          %p228 = pneg %p103
        $region18: #{tpu_custom_call.1} parent=11 // pred_check_branch
          %230 = sbr.rel (%p228) target = $region20
        $region19: #{tpu_custom_call.1} parent=11 // pred_region
          _
        $region20: #{tpu_custom_call.1} parent=11 // pred_fallthru
          _
        // Predicated region
        $region21: #{tpu_custom_call.1} parent=11 // pred_check
          %p231 = pneg %p124
        $region22: #{tpu_custom_call.1} parent=11 // pred_check_branch
          %233 = sbr.rel (%p231) target = $region24
        $region23: #{tpu_custom_call.1} parent=11 // pred_region
          _
        $region24: #{tpu_custom_call.1} parent=11 // pred_fallthru
          _
        // Predicated region
        $region25: #{tpu_custom_call.1} parent=11 // pred_check
          %p234 = pneg %p145
        $region26: #{tpu_custom_call.1} parent=11 // pred_check_branch
          %236 = sbr.rel (%p234) target = $region28
        $region27: #{tpu_custom_call.1} parent=11 // pred_region
          _
        $region28: #{tpu_custom_call.1} parent=11 // pred_fallthru
          _
      $region12: #{tpu_custom_call.1} parent=5 // pred_fallthru
        _
      %p237 = scmp.lt.s32.totalorder %s23, 4
      // Predicated region
      $region29: #{tpu_custom_call.1} parent=5 // pred_check
        %p238 = pneg %p237
      $region30: #{tpu_custom_call.1} parent=5 // pred_check_branch
        %240 = sbr.rel (%p238) target = $region32
      $region31: #{tpu_custom_call.1} parent=5 // pred_region
        // Predicated region
        $region33: #{tpu_custom_call.1} parent=31 // pred_check
          %p241 = pneg %p55
        $region34: #{tpu_custom_call.1} parent=31 // pred_check_branch
          %243 = sbr.rel (%p241) target = $region36
        $region35: #{tpu_custom_call.1} parent=31 // pred_region
          %s244 = sand.u32 %s45, 1
          %s245 = scalar_lea.sflag [#allocation4], %s244
          %s246 = sand.u32 %s45, 1
          %s247 = smul.addr %s246, 256
          %s248 = scalar_lea.vmem [#allocation3], %s247
          %s249 = smul.u32 16, %s30
          %251 = vsyncadd %s245, 0
          %s252 = smul.addr %s249, 2
          %s253 = smul.addr %s252, 8
          %s254 = scalar_lea.hbm %s0, %s253
          %s255 = sshll.u32 %s254, 4
          %s256 = int_to_ptr.hbm [resolvable:$true] %s255
          %s257 = sshll.u32 %s248, 4
          %s258 = int_to_ptr.vmem [resolvable:$true] %s257
          %263 = dma.hbm_to_vmem [thread:$0]  %s256, 4096, %s258, %s245, 128, 128, 8
        $region36: #{tpu_custom_call.1} parent=31 // pred_fallthru
          _
      $region32: #{tpu_custom_call.1} parent=5 // pred_fallthru
        _
      %p264 = scmp.le.s32.totalorder 1, %s23
      %p265 = scmp.lt.s32.totalorder %s23, 5
      %p266 = pnand %p264, %p265
      %p267 = pneg %p266
      // Predicated region
      $region37: #{tpu_custom_call.1} parent=5 // pred_check
        _
      $region38: #{tpu_custom_call.1} parent=5 // pred_check_branch
        %269 = sbr.rel (%p266) target = $region40
      $region39: #{tpu_custom_call.1} parent=5 // pred_region
        %s270 = ssub.s32 %s23, 1
        %s271 = sand.u32 %s48, 1
        %s272 = scalar_lea.sflag [#allocation4], %s271
        %s273 = sand.u32 %s48, 1
        %s274 = smul.addr %s273, 256
        %s275 = scalar_lea.vmem [#allocation3], %s274
        // Predicated region
        $region41: #{tpu_custom_call.1} parent=39 // pred_check
          %p276 = pneg %p61
        $region42: #{tpu_custom_call.1} parent=39 // pred_check_branch
          %278 = sbr.rel (%p276) target = $region44
        $region43: #{tpu_custom_call.1} parent=39 // pred_region
          %280 = dma.done %s272, 4096
        $region44: #{tpu_custom_call.1} parent=39 // pred_fallthru
          _
        // Predicated region
        $region45: #{tpu_custom_call.1} parent=39 // pred_check
          %p281 = pneg %p82
        $region46: #{tpu_custom_call.1} parent=39 // pred_check_branch
          %283 = sbr.rel (%p281) target = $region48
        $region47: #{tpu_custom_call.1} parent=39 // pred_region
          %285 = dma.done [#allocation7], 18432
        $region48: #{tpu_custom_call.1} parent=39 // pred_fallthru
          _
        %s286 = sand.u32 %s48, 1
        %s287 = scalar_lea.sflag [#allocation4], %s286
        %s288 = sand.u32 %s48, 1
        %s289 = smul.addr %s288, 256
        %s290 = scalar_lea.vmem [#allocation3], %s289
        %p291 = pneg %p61
        %p292 = pneg %p58
        %p293 = pneg %p82
        %p294 = pneg %p79
        %p295 = pneg %p103
        %p296 = pneg %p100
        %p297 = pneg %p124
        %p298 = pneg %p121
        %p299 = pneg %p145
        %p300 = pneg %p142
        %p301 = pneg %p173
        %p302 = pneg %p170
        %s303 = sand.u32 %s160, 1
        %s304 = scalar_lea.sflag [#allocation5], %s303
        %s305 = sand.u32 %s160, 1
        %s306 = smul.addr %s305, 128
        %s307 = scalar_lea.vmem [#allocation8], %s306
        %p308 = pneg %p199
        %p309 = pneg %p196
        %s310 = sand.u32 %s186, 1
        %s311 = scalar_lea.sflag [#allocation10], %s310
        %s312 = sand.u32 %s186, 1
        %s313 = smul.addr %s312, 2
        %s314 = scalar_lea.vmem [#allocation9], %s313
        %s315 = smul.u32 16, %s32
        %s316 = smul.u32 8, %s33
        %v317 = vld [vmem:[%s3] sm:$0x1]
        %v318 = vld [vmem:[%s4] sm:$0x1]
        %319 = vst [vmem:[#allocation2] sm:$0xff] 0.0
        %320 = vst [vmem:[#allocation2 + $0x8] sm:$0xff] 0.0
        %321 = vst [vmem:[#allocation2 + $0x10] sm:$0x3] 0.0
        %322 = vst [vmem:[#allocation2 + $0x18] sm:$0xff] 0.0
        %323 = vst [vmem:[#allocation2 + $0x20] sm:$0xff] 0.0
        %324 = vst [vmem:[#allocation2 + $0x28] sm:$0x3] 0.0
        %325 = vst [vmem:[#allocation2 + $0x30] sm:$0xff] 0.0
        %326 = vst [vmem:[#allocation2 + $0x38] sm:$0xff] 0.0
        %327 = vst [vmem:[#allocation2 + $0x40] sm:$0x3] 0.0
        %328 = vst [vmem:[#allocation2 + $0x48] sm:$0xff] 0.0
        %329 = vst [vmem:[#allocation2 + $0x50] sm:$0xff] 0.0
        %330 = vst [vmem:[#allocation2 + $0x58] sm:$0x3] 0.0
        %331 = vst [vmem:[#allocation2 + $0x60] sm:$0xff] 0.0
        %332 = vst [vmem:[#allocation2 + $0x68] sm:$0xff] 0.0
        %333 = vst [vmem:[#allocation2 + $0x70] sm:$0x3] 0.0
        %334 = vst [vmem:[#allocation2 + $0x78] sm:$0xff] 0.0
        %335 = vst [vmem:[#allocation2 + $0x80] sm:$0xff] 0.0
        %336 = vst [vmem:[#allocation2 + $0x88] sm:$0x3] 0.0
        %337 = vst [vmem:[#allocation2 + $0x90] sm:$0xff] 0.0
        %338 = vst [vmem:[#allocation2 + $0x98] sm:$0xff] 0.0
        %339 = vst [vmem:[#allocation2 + $0xa0] sm:$0x3] 0.0
        %340 = vst [vmem:[#allocation2 + $0xa8] sm:$0xff] 0.0
        %341 = vst [vmem:[#allocation2 + $0xb0] sm:$0xff] 0.0
        %342 = vst [vmem:[#allocation2 + $0xb8] sm:$0x3] 0.0
        %343 = vst [vmem:[#allocation2 + $0xc0] sm:$0xff] 0.0
        %344 = vst [vmem:[#allocation2 + $0xc8] sm:$0xff] 0.0
        %345 = vst [vmem:[#allocation2 + $0xd0] sm:$0x3] 0.0
        %346 = vst [vmem:[#allocation2 + $0xd8] sm:$0xff] 0.0
        %347 = vst [vmem:[#allocation2 + $0xe0] sm:$0xff] 0.0
        %348 = vst [vmem:[#allocation2 + $0xe8] sm:$0x3] 0.0
        %s349 = smul.u32 %s33, 8
        %s350 = ssub.s32 %s349, 1
        %p351 = scmp.ge.s32.totalorder %s350, 0
        %p352 = scmp.lt.s32.totalorder %s350, 16
        %p353 = pnand %p351, %p352
        %p354 = pneg %p353
        // Predicated region
        $region49: #{tpu_custom_call.1} parent=39 // pred_check
          _
        $region50: #{tpu_custom_call.1} parent=39 // pred_check_branch
          %356 = sbr.rel (%p353) target = $region52
        $region51: #{tpu_custom_call.1} parent=39 // pred_region
          %s357 = smul.u32 %s350, 16
          %s358 = scalar_lea.vmem %s275, %s357 [#allocation3]
          %v359 = vld [vmem:[%s358] sm:$0xff]
          %v360 = vld [vmem:[%s358 + $0x8] sm:$0xff]
          %v362 = vperm.slane %v317, 0
          %v364 = vmul.f32 %v359, %v362
          %v365 = vmul.f32 %v360, %v362
          %v367 = vperm.slane %v318, 0
          %v369 = vadd.f32 %v364, %v367
          %v370 = vadd.f32 %v365, %v367
          %371 = vst [vmem:[#allocation2 + $0x1] sm:$0xff] %v369
          %372 = vst [vmem:[#allocation2 + $0x9] sm:$0xff] %v370
        $region52: #{tpu_custom_call.1} parent=39 // pred_fallthru
          _
        %p373 = scmp.ge.s32.totalorder %s349, 0
        %p374 = scmp.lt.s32.totalorder %s349, 16
        %p375 = pnand %p373, %p374
        %p376 = pneg %p375
        // Predicated region
        $region53: #{tpu_custom_call.1} parent=39 // pred_check
          _
        $region54: #{tpu_custom_call.1} parent=39 // pred_check_branch
          %378 = sbr.rel (%p375) target = $region56
        $region55: #{tpu_custom_call.1} parent=39 // pred_region
          %s379 = smul.u32 %s349, 16
          %s380 = scalar_lea.vmem %s275, %s379 [#allocation3]
          %v381 = vld [vmem:[%s380] sm:$0xff]
          %v382 = vld [vmem:[%s380 + $0x8] sm:$0xff]
          %v384 = vperm.slane %v317, 0
          %v386 = vmul.f32 %v381, %v384
          %v387 = vmul.f32 %v382, %v384
          %v389 = vperm.slane %v318, 0
          %v391 = vadd.f32 %v386, %v389
          %v392 = vadd.f32 %v387, %v389
          %s393 = scalar_lea.vmem [#allocation2], 24
          %394 = vst [vmem:[%s393 + $0x1] sm:$0xff] %v391
          %395 = vst [vmem:[%s393 + $0x9] sm:$0xff] %v392
        $region56: #{tpu_custom_call.1} parent=39 // pred_fallthru
          _
        %s396 = sadd.s32 %s349, 1
        %p397 = scmp.ge.s32.totalorder %s396, 0
        %p398 = scmp.lt.s32.totalorder %s396, 16
        %p399 = pnand %p397, %p398
        %p400 = pneg %p399
        // Predicated region
        $region57: #{tpu_custom_call.1} parent=39 // pred_check
          _
        $region58: #{tpu_custom_call.1} parent=39 // pred_check_branch
          %402 = sbr.rel (%p399) target = $region60
        $region59: #{tpu_custom_call.1} parent=39 // pred_region
          %s403 = smul.u32 %s396, 16
          %s404 = scalar_lea.vmem %s275, %s403 [#allocation3]
          %v405 = vld [vmem:[%s404] sm:$0xff]
          %v406 = vld [vmem:[%s404 + $0x8] sm:$0xff]
          %v408 = vperm.slane %v317, 0
          %v410 = vmul.f32 %v405, %v408
          %v411 = vmul.f32 %v406, %v408
          %v413 = vperm.slane %v318, 0
          %v415 = vadd.f32 %v410, %v413
          %v416 = vadd.f32 %v411, %v413
          %s417 = scalar_lea.vmem [#allocation2], 48
          %418 = vst [vmem:[%s417 + $0x1] sm:$0xff] %v415
          %419 = vst [vmem:[%s417 + $0x9] sm:$0xff] %v416
        $region60: #{tpu_custom_call.1} parent=39 // pred_fallthru
          _
        %s420 = sadd.s32 %s349, 2
        %p421 = scmp.ge.s32.totalorder %s420, 0
        %p422 = scmp.lt.s32.totalorder %s420, 16
        %p423 = pnand %p421, %p422
        %p424 = pneg %p423
        // Predicated region
        $region61: #{tpu_custom_call.1} parent=39 // pred_check
          _
        $region62: #{tpu_custom_call.1} parent=39 // pred_check_branch
          %426 = sbr.rel (%p423) target = $region64
        $region63: #{tpu_custom_call.1} parent=39 // pred_region
          %s427 = smul.u32 %s420, 16
          %s428 = scalar_lea.vmem %s275, %s427 [#allocation3]
          %v429 = vld [vmem:[%s428] sm:$0xff]
          %v430 = vld [vmem:[%s428 + $0x8] sm:$0xff]
          %v432 = vperm.slane %v317, 0
          %v434 = vmul.f32 %v429, %v432
          %v435 = vmul.f32 %v430, %v432
          %v437 = vperm.slane %v318, 0
          %v439 = vadd.f32 %v434, %v437
          %v440 = vadd.f32 %v435, %v437
          %s441 = scalar_lea.vmem [#allocation2], 72
          %442 = vst [vmem:[%s441 + $0x1] sm:$0xff] %v439
          %443 = vst [vmem:[%s441 + $0x9] sm:$0xff] %v440
        $region64: #{tpu_custom_call.1} parent=39 // pred_fallthru
          _
        %s444 = sadd.s32 %s349, 3
        %p445 = scmp.ge.s32.totalorder %s444, 0
        %p446 = scmp.lt.s32.totalorder %s444, 16
        %p447 = pnand %p445, %p446
        %p448 = pneg %p447
        // Predicated region
        $region65: #{tpu_custom_call.1} parent=39 // pred_check
          _
        $region66: #{tpu_custom_call.1} parent=39 // pred_check_branch
          %450 = sbr.rel (%p447) target = $region68
        $region67: #{tpu_custom_call.1} parent=39 // pred_region
          %s451 = smul.u32 %s444, 16
          %s452 = scalar_lea.vmem %s275, %s451 [#allocation3]
          %v453 = vld [vmem:[%s452] sm:$0xff]
          %v454 = vld [vmem:[%s452 + $0x8] sm:$0xff]
          %v456 = vperm.slane %v317, 0
          %v458 = vmul.f32 %v453, %v456
          %v459 = vmul.f32 %v454, %v456
          %v461 = vperm.slane %v318, 0
          %v463 = vadd.f32 %v458, %v461
          %v464 = vadd.f32 %v459, %v461
          %s465 = scalar_lea.vmem [#allocation2], 96
          %466 = vst [vmem:[%s465 + $0x1] sm:$0xff] %v463
          %467 = vst [vmem:[%s465 + $0x9] sm:$0xff] %v464
        $region68: #{tpu_custom_call.1} parent=39 // pred_fallthru
          _
        %s468 = sadd.s32 %s349, 4
        %p469 = scmp.ge.s32.totalorder %s468, 0
        %p470 = scmp.lt.s32.totalorder %s468, 16
        %p471 = pnand %p469, %p470
        %p472 = pneg %p471
        // Predicated region
        $region69: #{tpu_custom_call.1} parent=39 // pred_check
          _
        $region70: #{tpu_custom_call.1} parent=39 // pred_check_branch
          %474 = sbr.rel (%p471) target = $region72
        $region71: #{tpu_custom_call.1} parent=39 // pred_region
          %s475 = smul.u32 %s468, 16
          %s476 = scalar_lea.vmem %s275, %s475 [#allocation3]
          %v477 = vld [vmem:[%s476] sm:$0xff]
          %v478 = vld [vmem:[%s476 + $0x8] sm:$0xff]
          %v480 = vperm.slane %v317, 0
          %v482 = vmul.f32 %v477, %v480
          %v483 = vmul.f32 %v478, %v480
          %v485 = vperm.slane %v318, 0
          %v487 = vadd.f32 %v482, %v485
          %v488 = vadd.f32 %v483, %v485
          %s489 = scalar_lea.vmem [#allocation2], 120
          %490 = vst [vmem:[%s489 + $0x1] sm:$0xff] %v487
          %491 = vst [vmem:[%s489 + $0x9] sm:$0xff] %v488
        $region72: #{tpu_custom_call.1} parent=39 // pred_fallthru
          _
        %s492 = sadd.s32 %s349, 5
        %p493 = scmp.ge.s32.totalorder %s492, 0
        %p494 = scmp.lt.s32.totalorder %s492, 16
        %p495 = pnand %p493, %p494
        %p496 = pneg %p495
        // Predicated region
        $region73: #{tpu_custom_call.1} parent=39 // pred_check
          _
        $region74: #{tpu_custom_call.1} parent=39 // pred_check_branch
          %498 = sbr.rel (%p495) target = $region76
        $region75: #{tpu_custom_call.1} parent=39 // pred_region
          %s499 = smul.u32 %s492, 16
          %s500 = scalar_lea.vmem %s275, %s499 [#allocation3]
          %v501 = vld [vmem:[%s500] sm:$0xff]
          %v502 = vld [vmem:[%s500 + $0x8] sm:$0xff]
          %v504 = vperm.slane %v317, 0
          %v506 = vmul.f32 %v501, %v504
          %v507 = vmul.f32 %v502, %v504
          %v509 = vperm.slane %v318, 0
          %v511 = vadd.f32 %v506, %v509
          %v512 = vadd.f32 %v507, %v509
          %s513 = scalar_lea.vmem [#allocation2], 144
          %514 = vst [vmem:[%s513 + $0x1] sm:$0xff] %v511
          %515 = vst [vmem:[%s513 + $0x9] sm:$0xff] %v512
        $region76: #{tpu_custom_call.1} parent=39 // pred_fallthru
          _
        %s516 = sadd.s32 %s349, 6
        %p517 = scmp.ge.s32.totalorder %s516, 0
        %p518 = scmp.lt.s32.totalorder %s516, 16
        %p519 = pnand %p517, %p518
        %p520 = pneg %p519
        // Predicated region
        $region77: #{tpu_custom_call.1} parent=39 // pred_check
          _
        $region78: #{tpu_custom_call.1} parent=39 // pred_check_branch
          %522 = sbr.rel (%p519) target = $region80
        $region79: #{tpu_custom_call.1} parent=39 // pred_region
          %s523 = smul.u32 %s516, 16
          %s524 = scalar_lea.vmem %s275, %s523 [#allocation3]
          %v525 = vld [vmem:[%s524] sm:$0xff]
          %v526 = vld [vmem:[%s524 + $0x8] sm:$0xff]
          %v528 = vperm.slane %v317, 0
          %v530 = vmul.f32 %v525, %v528
          %v531 = vmul.f32 %v526, %v528
          %v533 = vperm.slane %v318, 0
          %v535 = vadd.f32 %v530, %v533
          %v536 = vadd.f32 %v531, %v533
          %s537 = scalar_lea.vmem [#allocation2], 168
          %538 = vst [vmem:[%s537 + $0x1] sm:$0xff] %v535
          %539 = vst [vmem:[%s537 + $0x9] sm:$0xff] %v536
        $region80: #{tpu_custom_call.1} parent=39 // pred_fallthru
          _
        %s540 = sadd.s32 %s349, 7
        %p541 = scmp.ge.s32.totalorder %s540, 0
        %p542 = scmp.lt.s32.totalorder %s540, 16
        %p543 = pnand %p541, %p542
        %p544 = pneg %p543
        // Predicated region
        $region81: #{tpu_custom_call.1} parent=39 // pred_check
          _
        $region82: #{tpu_custom_call.1} parent=39 // pred_check_branch
          %546 = sbr.rel (%p543) target = $region84
        $region83: #{tpu_custom_call.1} parent=39 // pred_region
          %s547 = smul.u32 %s540, 16
          %s548 = scalar_lea.vmem %s275, %s547 [#allocation3]
          %v549 = vld [vmem:[%s548] sm:$0xff]
          %v550 = vld [vmem:[%s548 + $0x8] sm:$0xff]
          %v552 = vperm.slane %v317, 0
          %v554 = vmul.f32 %v549, %v552
          %v555 = vmul.f32 %v550, %v552
          %v557 = vperm.slane %v318, 0
          %v559 = vadd.f32 %v554, %v557
          %v560 = vadd.f32 %v555, %v557
          %s561 = scalar_lea.vmem [#allocation2], 192
          %562 = vst [vmem:[%s561 + $0x1] sm:$0xff] %v559
          %563 = vst [vmem:[%s561 + $0x9] sm:$0xff] %v560
        $region84: #{tpu_custom_call.1} parent=39 // pred_fallthru
          _
        %s564 = sadd.s32 %s349, 8
        %p565 = scmp.ge.s32.totalorder %s564, 0
        %p566 = scmp.lt.s32.totalorder %s564, 16
        %p567 = pnand %p565, %p566
        %p568 = pneg %p567
        // Predicated region
        $region85: #{tpu_custom_call.1} parent=39 // pred_check
          _
        $region86: #{tpu_custom_call.1} parent=39 // pred_check_branch
          %570 = sbr.rel (%p567) target = $region88
        $region87: #{tpu_custom_call.1} parent=39 // pred_region
          %s571 = smul.u32 %s564, 16
          %s572 = scalar_lea.vmem %s275, %s571 [#allocation3]
          %v573 = vld [vmem:[%s572] sm:$0xff]
          %v574 = vld [vmem:[%s572 + $0x8] sm:$0xff]
          %v576 = vperm.slane %v317, 0
          %v578 = vmul.f32 %v573, %v576
          %v579 = vmul.f32 %v574, %v576
          %v581 = vperm.slane %v318, 0
          %v583 = vadd.f32 %v578, %v581
          %v584 = vadd.f32 %v579, %v581
          %s585 = scalar_lea.vmem [#allocation2], 216
          %586 = vst [vmem:[%s585 + $0x1] sm:$0xff] %v583
          %587 = vst [vmem:[%s585 + $0x9] sm:$0xff] %v584
        $region88: #{tpu_custom_call.1} parent=39 // pred_fallthru
          _
        %v588 = vld [vmem:[#allocation2] sm:$0xff]
        %v589 = vld [vmem:[#allocation2 + $0x8] sm:$0xff]
        %v590 = vld [vmem:[#allocation2 + $0x18] sm:$0xff]
        %v591 = vld [vmem:[#allocation2 + $0x20] sm:$0xff]
        %v592 = vld [vmem:[#allocation2 + $0x30] sm:$0xff]
        %v593 = vld [vmem:[#allocation2 + $0x38] sm:$0xff]
        %v594 = vld [vmem:[#allocation2 + $0x48] sm:$0xff]
        %v595 = vld [vmem:[#allocation2 + $0x50] sm:$0xff]
        %v596 = vld [vmem:[#allocation2 + $0x60] sm:$0xff]
        %v597 = vld [vmem:[#allocation2 + $0x68] sm:$0xff]
        %v598 = vld [vmem:[#allocation2 + $0x78] sm:$0xff]
        %v599 = vld [vmem:[#allocation2 + $0x80] sm:$0xff]
        %v600 = vld [vmem:[#allocation2 + $0x90] sm:$0xff]
        %v601 = vld [vmem:[#allocation2 + $0x98] sm:$0xff]
        %v602 = vld [vmem:[#allocation2 + $0xa8] sm:$0xff]
        %v603 = vld [vmem:[#allocation2 + $0xb0] sm:$0xff]
        %v604 = vld [vmem:[#allocation2 + $0x1] sm:$0xff]
        %v605 = vld [vmem:[#allocation2 + $0x9] sm:$0xff]
        %v606 = vld [vmem:[#allocation2 + $0x19] sm:$0xff]
        %v607 = vld [vmem:[#allocation2 + $0x21] sm:$0xff]
        %v608 = vld [vmem:[#allocation2 + $0x31] sm:$0xff]
        %v609 = vld [vmem:[#allocation2 + $0x39] sm:$0xff]
        %v610 = vld [vmem:[#allocation2 + $0x49] sm:$0xff]
        %v611 = vld [vmem:[#allocation2 + $0x51] sm:$0xff]
        %v612 = vld [vmem:[#allocation2 + $0x61] sm:$0xff]
        %v613 = vld [vmem:[#allocation2 + $0x69] sm:$0xff]
        %v614 = vld [vmem:[#allocation2 + $0x79] sm:$0xff]
        %v615 = vld [vmem:[#allocation2 + $0x81] sm:$0xff]
        %v616 = vld [vmem:[#allocation2 + $0x91] sm:$0xff]
        %v617 = vld [vmem:[#allocation2 + $0x99] sm:$0xff]
        %v618 = vld [vmem:[#allocation2 + $0xa9] sm:$0xff]
        %v619 = vld [vmem:[#allocation2 + $0xb1] sm:$0xff]
        %v620 = vld [vmem:[#allocation2 + $0x2] sm:$0xff]
        %v621 = vld [vmem:[#allocation2 + $0xa] sm:$0xff]
        %v622 = vld [vmem:[#allocation2 + $0x1a] sm:$0xff]
        %v623 = vld [vmem:[#allocation2 + $0x22] sm:$0xff]
        %v624 = vld [vmem:[#allocation2 + $0x32] sm:$0xff]
        %v625 = vld [vmem:[#allocation2 + $0x3a] sm:$0xff]
        %v626 = vld [vmem:[#allocation2 + $0x4a] sm:$0xff]
        %v627 = vld [vmem:[#allocation2 + $0x52] sm:$0xff]
        %v628 = vld [vmem:[#allocation2 + $0x62] sm:$0xff]
        %v629 = vld [vmem:[#allocation2 + $0x6a] sm:$0xff]
        %v630 = vld [vmem:[#allocation2 + $0x7a] sm:$0xff]
        %v631 = vld [vmem:[#allocation2 + $0x82] sm:$0xff]
        %v632 = vld [vmem:[#allocation2 + $0x92] sm:$0xff]
        %v633 = vld [vmem:[#allocation2 + $0x9a] sm:$0xff]
        %v634 = vld [vmem:[#allocation2 + $0xaa] sm:$0xff]
        %v635 = vld [vmem:[#allocation2 + $0xb2] sm:$0xff]
        %s636 = scalar_lea.vmem [#allocation2], 24
        %v637 = vld [vmem:[%s636] sm:$0xff]
        %v638 = vld [vmem:[%s636 + $0x8] sm:$0xff]
        %v639 = vld [vmem:[%s636 + $0x18] sm:$0xff]
        %v640 = vld [vmem:[%s636 + $0x20] sm:$0xff]
        %v641 = vld [vmem:[%s636 + $0x30] sm:$0xff]
        %v642 = vld [vmem:[%s636 + $0x38] sm:$0xff]
        %v643 = vld [vmem:[%s636 + $0x48] sm:$0xff]
        %v644 = vld [vmem:[%s636 + $0x50] sm:$0xff]
        %v645 = vld [vmem:[%s636 + $0x60] sm:$0xff]
        %v646 = vld [vmem:[%s636 + $0x68] sm:$0xff]
        %v647 = vld [vmem:[%s636 + $0x78] sm:$0xff]
        %v648 = vld [vmem:[%s636 + $0x80] sm:$0xff]
        %v649 = vld [vmem:[%s636 + $0x90] sm:$0xff]
        %v650 = vld [vmem:[%s636 + $0x98] sm:$0xff]
        %v651 = vld [vmem:[%s636 + $0xa8] sm:$0xff]
        %v652 = vld [vmem:[%s636 + $0xb0] sm:$0xff]
        %v653 = vld [vmem:[%s636 + $0x1] sm:$0xff]
        %v654 = vld [vmem:[%s636 + $0x9] sm:$0xff]
        %v655 = vld [vmem:[%s636 + $0x19] sm:$0xff]
        %v656 = vld [vmem:[%s636 + $0x21] sm:$0xff]
        %v657 = vld [vmem:[%s636 + $0x31] sm:$0xff]
        %v658 = vld [vmem:[%s636 + $0x39] sm:$0xff]
        %v659 = vld [vmem:[%s636 + $0x49] sm:$0xff]
        %v660 = vld [vmem:[%s636 + $0x51] sm:$0xff]
        %v661 = vld [vmem:[%s636 + $0x61] sm:$0xff]
        %v662 = vld [vmem:[%s636 + $0x69] sm:$0xff]
        %v663 = vld [vmem:[%s636 + $0x79] sm:$0xff]
        %v664 = vld [vmem:[%s636 + $0x81] sm:$0xff]
        %v665 = vld [vmem:[%s636 + $0x91] sm:$0xff]
        %v666 = vld [vmem:[%s636 + $0x99] sm:$0xff]
        %v667 = vld [vmem:[%s636 + $0xa9] sm:$0xff]
        %v668 = vld [vmem:[%s636 + $0xb1] sm:$0xff]
        %v669 = vld [vmem:[%s636 + $0x2] sm:$0xff]
        %v670 = vld [vmem:[%s636 + $0xa] sm:$0xff]
        %v671 = vld [vmem:[%s636 + $0x1a] sm:$0xff]
        %v672 = vld [vmem:[%s636 + $0x22] sm:$0xff]
        %v673 = vld [vmem:[%s636 + $0x32] sm:$0xff]
        %v674 = vld [vmem:[%s636 + $0x3a] sm:$0xff]
        %v675 = vld [vmem:[%s636 + $0x4a] sm:$0xff]
        %v676 = vld [vmem:[%s636 + $0x52] sm:$0xff]
        %v677 = vld [vmem:[%s636 + $0x62] sm:$0xff]
        %v678 = vld [vmem:[%s636 + $0x6a] sm:$0xff]
        %v679 = vld [vmem:[%s636 + $0x7a] sm:$0xff]
        %v680 = vld [vmem:[%s636 + $0x82] sm:$0xff]
        %v681 = vld [vmem:[%s636 + $0x92] sm:$0xff]
        %v682 = vld [vmem:[%s636 + $0x9a] sm:$0xff]
        %v683 = vld [vmem:[%s636 + $0xaa] sm:$0xff]
        %v684 = vld [vmem:[%s636 + $0xb2] sm:$0xff]
        %s685 = scalar_lea.vmem [#allocation2], 48
        %v686 = vld [vmem:[%s685] sm:$0xff]
        %v687 = vld [vmem:[%s685 + $0x8] sm:$0xff]
        %v688 = vld [vmem:[%s685 + $0x18] sm:$0xff]
        %v689 = vld [vmem:[%s685 + $0x20] sm:$0xff]
        %v690 = vld [vmem:[%s685 + $0x30] sm:$0xff]
        %v691 = vld [vmem:[%s685 + $0x38] sm:$0xff]
        %v692 = vld [vmem:[%s685 + $0x48] sm:$0xff]
        %v693 = vld [vmem:[%s685 + $0x50] sm:$0xff]
        %v694 = vld [vmem:[%s685 + $0x60] sm:$0xff]
        %v695 = vld [vmem:[%s685 + $0x68] sm:$0xff]
        %v696 = vld [vmem:[%s685 + $0x78] sm:$0xff]
        %v697 = vld [vmem:[%s685 + $0x80] sm:$0xff]
        %v698 = vld [vmem:[%s685 + $0x90] sm:$0xff]
        %v699 = vld [vmem:[%s685 + $0x98] sm:$0xff]
        %v700 = vld [vmem:[%s685 + $0xa8] sm:$0xff]
        %v701 = vld [vmem:[%s685 + $0xb0] sm:$0xff]
        %v702 = vld [vmem:[%s685 + $0x1] sm:$0xff]
        %v703 = vld [vmem:[%s685 + $0x9] sm:$0xff]
        %v704 = vld [vmem:[%s685 + $0x19] sm:$0xff]
        %v705 = vld [vmem:[%s685 + $0x21] sm:$0xff]
        %v706 = vld [vmem:[%s685 + $0x31] sm:$0xff]
        %v707 = vld [vmem:[%s685 + $0x39] sm:$0xff]
        %v708 = vld [vmem:[%s685 + $0x49] sm:$0xff]
        %v709 = vld [vmem:[%s685 + $0x51] sm:$0xff]
        %v710 = vld [vmem:[%s685 + $0x61] sm:$0xff]
        %v711 = vld [vmem:[%s685 + $0x69] sm:$0xff]
        %v712 = vld [vmem:[%s685 + $0x79] sm:$0xff]
        %v713 = vld [vmem:[%s685 + $0x81] sm:$0xff]
        %v714 = vld [vmem:[%s685 + $0x91] sm:$0xff]
        %v715 = vld [vmem:[%s685 + $0x99] sm:$0xff]
        %v716 = vld [vmem:[%s685 + $0xa9] sm:$0xff]
        %v717 = vld [vmem:[%s685 + $0xb1] sm:$0xff]
        %v718 = vld [vmem:[%s685 + $0x2] sm:$0xff]
        %v719 = vld [vmem:[%s685 + $0xa] sm:$0xff]
        %v720 = vld [vmem:[%s685 + $0x1a] sm:$0xff]
        %v721 = vld [vmem:[%s685 + $0x22] sm:$0xff]
        %v722 = vld [vmem:[%s685 + $0x32] sm:$0xff]
        %v723 = vld [vmem:[%s685 + $0x3a] sm:$0xff]
        %v724 = vld [vmem:[%s685 + $0x4a] sm:$0xff]
        %v725 = vld [vmem:[%s685 + $0x52] sm:$0xff]
        %v726 = vld [vmem:[%s685 + $0x62] sm:$0xff]
        %v727 = vld [vmem:[%s685 + $0x6a] sm:$0xff]
        %v728 = vld [vmem:[%s685 + $0x7a] sm:$0xff]
        %v729 = vld [vmem:[%s685 + $0x82] sm:$0xff]
        %v730 = vld [vmem:[%s685 + $0x92] sm:$0xff]
        %v731 = vld [vmem:[%s685 + $0x9a] sm:$0xff]
        %v732 = vld [vmem:[%s685 + $0xaa] sm:$0xff]
        %v733 = vld [vmem:[%s685 + $0xb2] sm:$0xff]
        %v734 = vld [vmem:[#allocation6] sm:$0xff]
        %v735 = vld [vmem:[#allocation6 + $0x8] sm:$0xff]
        %v736 = vld [vmem:[#allocation6 + $0x10] sm:$0xff]
        %v737 = vld [vmem:[#allocation6 + $0x18] sm:$0xff]
        %v738 = vld [vmem:[#allocation6 + $0x20] sm:$0xff]
        %v739 = vld [vmem:[#allocation6 + $0x28] sm:$0xff]
        %v740 = vld [vmem:[#allocation6 + $0x30] sm:$0xff]
        %v741 = vld [vmem:[#allocation6 + $0x38] sm:$0xff]
        %v742 = vld [vmem:[#allocation6 + $0x40] sm:$0xff]
        %v743 = vld [vmem:[#allocation6 + $0x48] sm:$0xff]
        %v744 = vld [vmem:[#allocation6 + $0x50] sm:$0xff]
        %v745 = vld [vmem:[#allocation6 + $0x58] sm:$0xff]
        %v746 = vld [vmem:[#allocation6 + $0x60] sm:$0xff]
        %v747 = vld [vmem:[#allocation6 + $0x68] sm:$0xff]
        %v748 = vld [vmem:[#allocation6 + $0x70] sm:$0xff]
        %v749 = vld [vmem:[#allocation6 + $0x78] sm:$0xff]
        %v750 = vld [vmem:[#allocation6 + $0x80] sm:$0xff]
        %v751 = vld [vmem:[#allocation6 + $0x88] sm:$0xff]
        %v752 = vld [vmem:[#allocation6 + $0x90] sm:$0xff]
        %v753 = vld [vmem:[#allocation6 + $0x98] sm:$0xff]
        %v754 = vld [vmem:[#allocation6 + $0xa0] sm:$0xff]
        %v755 = vld [vmem:[#allocation6 + $0xa8] sm:$0xff]
        %v756 = vld [vmem:[#allocation6 + $0xb0] sm:$0xff]
        %v757 = vld [vmem:[#allocation6 + $0xb8] sm:$0xff]
        %v758 = vld [vmem:[#allocation6 + $0xc0] sm:$0xff]
        %v759 = vld [vmem:[#allocation6 + $0xc8] sm:$0xff]
        %v760 = vld [vmem:[#allocation6 + $0xd0] sm:$0xff]
        %v761 = vld [vmem:[#allocation6 + $0xd8] sm:$0xff]
        %v762 = vld [vmem:[#allocation6 + $0xe0] sm:$0xff]
        %v763 = vld [vmem:[#allocation6 + $0xe8] sm:$0xff]
        %v764 = vld [vmem:[#allocation6 + $0xf0] sm:$0xff]
        %v765 = vld [vmem:[#allocation6 + $0xf8] sm:$0xff]
        %v766 = vld [vmem:[#allocation6 + $0x100] sm:$0xff]
        %v767 = vld [vmem:[#allocation6 + $0x108] sm:$0xff]
        %v768 = vld [vmem:[#allocation6 + $0x110] sm:$0xff]
        %v769 = vld [vmem:[#allocation6 + $0x118] sm:$0xff]
        %v770 = vld [vmem:[#allocation6 + $0x120] sm:$0xff]
        %v771 = vld [vmem:[#allocation6 + $0x128] sm:$0xff]
        %v772 = vld [vmem:[#allocation6 + $0x130] sm:$0xff]
        %v773 = vld [vmem:[#allocation6 + $0x138] sm:$0xff]
        %v774 = vld [vmem:[#allocation6 + $0x140] sm:$0xff]
        %v775 = vld [vmem:[#allocation6 + $0x148] sm:$0xff]
        %v776 = vld [vmem:[#allocation6 + $0x150] sm:$0xff]
        %v777 = vld [vmem:[#allocation6 + $0x158] sm:$0xff]
        %v778 = vld [vmem:[#allocation6 + $0x160] sm:$0xff]
        %v779 = vld [vmem:[#allocation6 + $0x168] sm:$0xff]
        %v780 = vld [vmem:[#allocation6 + $0x170] sm:$0xff]
        %v781 = vld [vmem:[#allocation6 + $0x178] sm:$0xff]
        %v782 = vld [vmem:[#allocation6 + $0x180] sm:$0xff]
        %v783 = vld [vmem:[#allocation6 + $0x188] sm:$0xff]
        %v784 = vld [vmem:[#allocation6 + $0x190] sm:$0xff]
        %v785 = vld [vmem:[#allocation6 + $0x198] sm:$0xff]
        %v786 = vld [vmem:[#allocation6 + $0x1a0] sm:$0xff]
        %v787 = vld [vmem:[#allocation6 + $0x1a8] sm:$0xff]
        %v788 = vld [vmem:[#allocation6 + $0x1b0] sm:$0xff]
        %v789 = vld [vmem:[#allocation6 + $0x1b8] sm:$0xff]
        %v790 = vld [vmem:[#allocation6 + $0x1c0] sm:$0xff]
        %v791 = vld [vmem:[#allocation6 + $0x1c8] sm:$0xff]
        %v792 = vld [vmem:[#allocation6 + $0x1d0] sm:$0xff]
        %v793 = vld [vmem:[#allocation6 + $0x1d8] sm:$0xff]
        %v794 = vld [vmem:[#allocation6 + $0x1e0] sm:$0xff]
        %v795 = vld [vmem:[#allocation6 + $0x1e8] sm:$0xff]
        %v796 = vld [vmem:[#allocation6 + $0x1f0] sm:$0xff]
        %v797 = vld [vmem:[#allocation6 + $0x1f8] sm:$0xff]
        %v798 = vld [vmem:[#allocation6 + $0x200] sm:$0xff]
        %v799 = vld [vmem:[#allocation6 + $0x208] sm:$0xff]
        %v800 = vld [vmem:[#allocation6 + $0x210] sm:$0xff]
        %v801 = vld [vmem:[#allocation6 + $0x218] sm:$0xff]
        %v802 = vld [vmem:[#allocation6 + $0x220] sm:$0xff]
        %v803 = vld [vmem:[#allocation6 + $0x228] sm:$0xff]
        %v804 = vld [vmem:[#allocation6 + $0x230] sm:$0xff]
        %v805 = vld [vmem:[#allocation6 + $0x238] sm:$0xff]
        %v806 = vld [vmem:[#allocation6 + $0x240] sm:$0xff]
        %v807 = vld [vmem:[#allocation6 + $0x248] sm:$0xff]
        %v808 = vld [vmem:[#allocation6 + $0x250] sm:$0xff]
        %v809 = vld [vmem:[#allocation6 + $0x258] sm:$0xff]
        %v810 = vld [vmem:[#allocation6 + $0x260] sm:$0xff]
        %v811 = vld [vmem:[#allocation6 + $0x268] sm:$0xff]
        %v812 = vld [vmem:[#allocation6 + $0x270] sm:$0xff]
        %v813 = vld [vmem:[#allocation6 + $0x278] sm:$0xff]
        %v814 = vld [vmem:[#allocation6 + $0x280] sm:$0xff]
        %v815 = vld [vmem:[#allocation6 + $0x288] sm:$0xff]
        %v816 = vld [vmem:[#allocation6 + $0x290] sm:$0xff]
        %v817 = vld [vmem:[#allocation6 + $0x298] sm:$0xff]
        %v818 = vld [vmem:[#allocation6 + $0x2a0] sm:$0xff]
        %v819 = vld [vmem:[#allocation6 + $0x2a8] sm:$0xff]
        %v820 = vld [vmem:[#allocation6 + $0x2b0] sm:$0xff]
        %v821 = vld [vmem:[#allocation6 + $0x2b8] sm:$0xff]
        %v822 = vld [vmem:[#allocation6 + $0x2c0] sm:$0xff]
        %v823 = vld [vmem:[#allocation6 + $0x2c8] sm:$0xff]
        %v824 = vld [vmem:[#allocation6 + $0x2d0] sm:$0xff]
        %v825 = vld [vmem:[#allocation6 + $0x2d8] sm:$0xff]
        %v826 = vld [vmem:[#allocation6 + $0x2e0] sm:$0xff]
        %v827 = vld [vmem:[#allocation6 + $0x2e8] sm:$0xff]
        %v828 = vld [vmem:[#allocation6 + $0x2f0] sm:$0xff]
        %v829 = vld [vmem:[#allocation6 + $0x2f8] sm:$0xff]
        %v830 = vld [vmem:[#allocation6 + $0x300] sm:$0xff]
        %v831 = vld [vmem:[#allocation6 + $0x308] sm:$0xff]
        %v832 = vld [vmem:[#allocation6 + $0x310] sm:$0xff]
        %v833 = vld [vmem:[#allocation6 + $0x318] sm:$0xff]
        %v834 = vld [vmem:[#allocation6 + $0x320] sm:$0xff]
        %v835 = vld [vmem:[#allocation6 + $0x328] sm:$0xff]
        %v836 = vld [vmem:[#allocation6 + $0x330] sm:$0xff]
        %v837 = vld [vmem:[#allocation6 + $0x338] sm:$0xff]
        %v838 = vld [vmem:[#allocation6 + $0x340] sm:$0xff]
        %v839 = vld [vmem:[#allocation6 + $0x348] sm:$0xff]
        %v840 = vld [vmem:[#allocation6 + $0x350] sm:$0xff]
        %v841 = vld [vmem:[#allocation6 + $0x358] sm:$0xff]
        %v842 = vld [vmem:[#allocation6 + $0x360] sm:$0xff]
        %v843 = vld [vmem:[#allocation6 + $0x368] sm:$0xff]
        %v844 = vld [vmem:[#allocation6 + $0x370] sm:$0xff]
        %v845 = vld [vmem:[#allocation6 + $0x378] sm:$0xff]
        %v846 = vld [vmem:[#allocation6 + $0x380] sm:$0xff]
        %v847 = vld [vmem:[#allocation6 + $0x388] sm:$0xff]
        %v848 = vld [vmem:[#allocation6 + $0x390] sm:$0xff]
        %v849 = vld [vmem:[#allocation6 + $0x398] sm:$0xff]
        %v850 = vld [vmem:[#allocation6 + $0x3a0] sm:$0xff]
        %v851 = vld [vmem:[#allocation6 + $0x3a8] sm:$0xff]
        %v852 = vld [vmem:[#allocation6 + $0x3b0] sm:$0xff]
        %v853 = vld [vmem:[#allocation6 + $0x3b8] sm:$0xff]
        %v854 = vld [vmem:[#allocation6 + $0x3c0] sm:$0xff]
        %v855 = vld [vmem:[#allocation6 + $0x3c8] sm:$0xff]
        %v856 = vld [vmem:[#allocation6 + $0x3d0] sm:$0xff]
        %v857 = vld [vmem:[#allocation6 + $0x3d8] sm:$0xff]
        %v858 = vld [vmem:[#allocation6 + $0x3e0] sm:$0xff]
        %v859 = vld [vmem:[#allocation6 + $0x3e8] sm:$0xff]
        %v860 = vld [vmem:[#allocation6 + $0x3f0] sm:$0xff]
        %v861 = vld [vmem:[#allocation6 + $0x3f8] sm:$0xff]
        %v862 = vld [vmem:[#allocation6 + $0x400] sm:$0xff]
        %v863 = vld [vmem:[#allocation6 + $0x408] sm:$0xff]
        %v864 = vld [vmem:[#allocation6 + $0x410] sm:$0xff]
        %v865 = vld [vmem:[#allocation6 + $0x418] sm:$0xff]
        %v866 = vld [vmem:[#allocation6 + $0x420] sm:$0xff]
        %v867 = vld [vmem:[#allocation6 + $0x428] sm:$0xff]
        %v868 = vld [vmem:[#allocation6 + $0x430] sm:$0xff]
        %v869 = vld [vmem:[#allocation6 + $0x438] sm:$0xff]
        %v870 = vld [vmem:[#allocation6 + $0x440] sm:$0xff]
        %v871 = vld [vmem:[#allocation6 + $0x448] sm:$0xff]
        %v872 = vld [vmem:[#allocation6 + $0x450] sm:$0xff]
        %v873 = vld [vmem:[#allocation6 + $0x458] sm:$0xff]
        %v874 = vld [vmem:[#allocation6 + $0x460] sm:$0xff]
        %v875 = vld [vmem:[#allocation6 + $0x468] sm:$0xff]
        %v876 = vld [vmem:[#allocation6 + $0x470] sm:$0xff]
        %v877 = vld [vmem:[#allocation6 + $0x478] sm:$0xff]
        %v878 = vld [vmem:[%s2] sm:$0x1]
        %v880 = vperm.slane %v878, 0
        %882 = vmatpush.msra.mxu0 %v749
        %883 = vmatpush.msra.mxu0 %v748
        %884 = vmatpush.msra.mxu0 %v747
        %885 = vmatpush.msra.mxu0 %v746
        %886 = vmatpush.msra.mxu0 %v745
        %887 = vmatpush.msra.mxu0 %v744
        %888 = vmatpush.msra.mxu0 %v743
        %889 = vmatpush.msra.mxu0 %v742
        %890 = vmatpush.msra.mxu0 %v741
        %891 = vmatpush.msra.mxu0 %v740
        %892 = vmatpush.msra.mxu0 %v739
        %893 = vmatpush.msra.mxu0 %v738
        %894 = vmatpush.msra.mxu0 %v737
        %895 = vmatpush.msra.mxu0 %v736
        %896 = vmatpush.msra.mxu0 %v735
        %897 = vmatpush.msra.mxu0 %v734
        %898 = vmatmul.f32.gmra.mxu0 %v588
        %v899 = vpop.f32.mrf.mxu0
        %v900 = vadd.f32 %v880, %v899
        %901 = vmatmul.f32.gmra.mxu0 %v589
        %v902 = vpop.f32.mrf.mxu0
        %v903 = vadd.f32 %v880, %v902
        %904 = vmatmul.f32.gmra.mxu0 %v590
        %v905 = vpop.f32.mrf.mxu0
        %v906 = vadd.f32 %v880, %v905
        %907 = vmatmul.f32.gmra.mxu0 %v591
        %v908 = vpop.f32.mrf.mxu0
        %v909 = vadd.f32 %v880, %v908
        %910 = vmatmul.f32.gmra.mxu0 %v592
        %v911 = vpop.f32.mrf.mxu0
        %v912 = vadd.f32 %v880, %v911
        %913 = vmatmul.f32.gmra.mxu0 %v593
        %v914 = vpop.f32.mrf.mxu0
        %v915 = vadd.f32 %v880, %v914
        %916 = vmatmul.f32.gmra.mxu0 %v594
        %v917 = vpop.f32.mrf.mxu0
        %v918 = vadd.f32 %v880, %v917
        %919 = vmatmul.f32.gmra.mxu0 %v595
        %v920 = vpop.f32.mrf.mxu0
        %v921 = vadd.f32 %v880, %v920
        %922 = vmatmul.f32.gmra.mxu0 %v596
        %v923 = vpop.f32.mrf.mxu0
        %v924 = vadd.f32 %v880, %v923
        %925 = vmatmul.f32.gmra.mxu0 %v597
        %v926 = vpop.f32.mrf.mxu0
        %v927 = vadd.f32 %v880, %v926
        %928 = vmatmul.f32.gmra.mxu0 %v598
        %v929 = vpop.f32.mrf.mxu0
        %v930 = vadd.f32 %v880, %v929
        %931 = vmatmul.f32.gmra.mxu0 %v599
        %v932 = vpop.f32.mrf.mxu0
        %v933 = vadd.f32 %v880, %v932
        %934 = vmatmul.f32.gmra.mxu0 %v600
        %v935 = vpop.f32.mrf.mxu0
        %v936 = vadd.f32 %v880, %v935
        %937 = vmatmul.f32.gmra.mxu0 %v601
        %v938 = vpop.f32.mrf.mxu0
        %v939 = vadd.f32 %v880, %v938
        %940 = vmatmul.f32.gmra.mxu0 %v602
        %v941 = vpop.f32.mrf.mxu0
        %v942 = vadd.f32 %v880, %v941
        %943 = vmatmul.f32.gmra.mxu0 %v603
        %v944 = vpop.f32.mrf.mxu0
        %v945 = vadd.f32 %v880, %v944
        %946 = vdwg.mxu0
        %947 = vmatpush.msra.mxu0 %v765
        %948 = vmatpush.msra.mxu0 %v764
        %949 = vmatpush.msra.mxu0 %v763
        %950 = vmatpush.msra.mxu0 %v762
        %951 = vmatpush.msra.mxu0 %v761
        %952 = vmatpush.msra.mxu0 %v760
        %953 = vmatpush.msra.mxu0 %v759
        %954 = vmatpush.msra.mxu0 %v758
        %955 = vmatpush.msra.mxu0 %v757
        %956 = vmatpush.msra.mxu0 %v756
        %957 = vmatpush.msra.mxu0 %v755
        %958 = vmatpush.msra.mxu0 %v754
        %959 = vmatpush.msra.mxu0 %v753
        %960 = vmatpush.msra.mxu0 %v752
        %961 = vmatpush.msra.mxu0 %v751
        %962 = vmatpush.msra.mxu0 %v750
        %963 = vmatmul.f32.gmra.mxu0 %v604
        %v964 = vpop.f32.mrf.mxu0
        %v965 = vadd.f32 %v900, %v964
        %966 = vmatmul.f32.gmra.mxu0 %v605
        %v967 = vpop.f32.mrf.mxu0
        %v968 = vadd.f32 %v903, %v967
        %969 = vmatmul.f32.gmra.mxu0 %v606
        %v970 = vpop.f32.mrf.mxu0
        %v971 = vadd.f32 %v906, %v970
        %972 = vmatmul.f32.gmra.mxu0 %v607
        %v973 = vpop.f32.mrf.mxu0
        %v974 = vadd.f32 %v909, %v973
        %975 = vmatmul.f32.gmra.mxu0 %v608
        %v976 = vpop.f32.mrf.mxu0
        %v977 = vadd.f32 %v912, %v976
        %978 = vmatmul.f32.gmra.mxu0 %v609
        %v979 = vpop.f32.mrf.mxu0
        %v980 = vadd.f32 %v915, %v979
        %981 = vmatmul.f32.gmra.mxu0 %v610
        %v982 = vpop.f32.mrf.mxu0
        %v983 = vadd.f32 %v918, %v982
        %984 = vmatmul.f32.gmra.mxu0 %v611
        %v985 = vpop.f32.mrf.mxu0
        %v986 = vadd.f32 %v921, %v985
        %987 = vmatmul.f32.gmra.mxu0 %v612
        %v988 = vpop.f32.mrf.mxu0
        %v989 = vadd.f32 %v924, %v988
        %990 = vmatmul.f32.gmra.mxu0 %v613
        %v991 = vpop.f32.mrf.mxu0
        %v992 = vadd.f32 %v927, %v991
        %993 = vmatmul.f32.gmra.mxu0 %v614
        %v994 = vpop.f32.mrf.mxu0
        %v995 = vadd.f32 %v930, %v994
        %996 = vmatmul.f32.gmra.mxu0 %v615
        %v997 = vpop.f32.mrf.mxu0
        %v998 = vadd.f32 %v933, %v997
        %999 = vmatmul.f32.gmra.mxu0 %v616
        %v1000 = vpop.f32.mrf.mxu0
        %v1001 = vadd.f32 %v936, %v1000
        %1002 = vmatmul.f32.gmra.mxu0 %v617
        %v1003 = vpop.f32.mrf.mxu0
        %v1004 = vadd.f32 %v939, %v1003
        %1005 = vmatmul.f32.gmra.mxu0 %v618
        %v1006 = vpop.f32.mrf.mxu0
        %v1007 = vadd.f32 %v942, %v1006
        %1008 = vmatmul.f32.gmra.mxu0 %v619
        %v1009 = vpop.f32.mrf.mxu0
        %v1010 = vadd.f32 %v945, %v1009
        %1011 = vdwg.mxu0
        %1012 = vmatpush.msra.mxu0 %v781
        %1013 = vmatpush.msra.mxu0 %v780
        %1014 = vmatpush.msra.mxu0 %v779
        %1015 = vmatpush.msra.mxu0 %v778
        %1016 = vmatpush.msra.mxu0 %v777
        %1017 = vmatpush.msra.mxu0 %v776
        %1018 = vmatpush.msra.mxu0 %v775
        %1019 = vmatpush.msra.mxu0 %v774
        %1020 = vmatpush.msra.mxu0 %v773
        %1021 = vmatpush.msra.mxu0 %v772
        %1022 = vmatpush.msra.mxu0 %v771
        %1023 = vmatpush.msra.mxu0 %v770
        %1024 = vmatpush.msra.mxu0 %v769
        %1025 = vmatpush.msra.mxu0 %v768
        %1026 = vmatpush.msra.mxu0 %v767
        %1027 = vmatpush.msra.mxu0 %v766
        %1028 = vmatmul.f32.gmra.mxu0 %v620
        %v1029 = vpop.f32.mrf.mxu0
        %v1030 = vadd.f32 %v965, %v1029
        %1031 = vmatmul.f32.gmra.mxu0 %v621
        %v1032 = vpop.f32.mrf.mxu0
        %v1033 = vadd.f32 %v968, %v1032
        %1034 = vmatmul.f32.gmra.mxu0 %v622
        %v1035 = vpop.f32.mrf.mxu0
        %v1036 = vadd.f32 %v971, %v1035
        %1037 = vmatmul.f32.gmra.mxu0 %v623
        %v1038 = vpop.f32.mrf.mxu0
        %v1039 = vadd.f32 %v974, %v1038
        %1040 = vmatmul.f32.gmra.mxu0 %v624
        %v1041 = vpop.f32.mrf.mxu0
        %v1042 = vadd.f32 %v977, %v1041
        %1043 = vmatmul.f32.gmra.mxu0 %v625
        %v1044 = vpop.f32.mrf.mxu0
        %v1045 = vadd.f32 %v980, %v1044
        %1046 = vmatmul.f32.gmra.mxu0 %v626
        %v1047 = vpop.f32.mrf.mxu0
        %v1048 = vadd.f32 %v983, %v1047
        %1049 = vmatmul.f32.gmra.mxu0 %v627
        %v1050 = vpop.f32.mrf.mxu0
        %v1051 = vadd.f32 %v986, %v1050
        %1052 = vmatmul.f32.gmra.mxu0 %v628
        %v1053 = vpop.f32.mrf.mxu0
        %v1054 = vadd.f32 %v989, %v1053
        %1055 = vmatmul.f32.gmra.mxu0 %v629
        %v1056 = vpop.f32.mrf.mxu0
        %v1057 = vadd.f32 %v992, %v1056
        %1058 = vmatmul.f32.gmra.mxu0 %v630
        %v1059 = vpop.f32.mrf.mxu0
        %v1060 = vadd.f32 %v995, %v1059
        %1061 = vmatmul.f32.gmra.mxu0 %v631
        %v1062 = vpop.f32.mrf.mxu0
        %v1063 = vadd.f32 %v998, %v1062
        %1064 = vmatmul.f32.gmra.mxu0 %v632
        %v1065 = vpop.f32.mrf.mxu0
        %v1066 = vadd.f32 %v1001, %v1065
        %1067 = vmatmul.f32.gmra.mxu0 %v633
        %v1068 = vpop.f32.mrf.mxu0
        %v1069 = vadd.f32 %v1004, %v1068
        %1070 = vmatmul.f32.gmra.mxu0 %v634
        %v1071 = vpop.f32.mrf.mxu0
        %v1072 = vadd.f32 %v1007, %v1071
        %1073 = vmatmul.f32.gmra.mxu0 %v635
        %v1074 = vpop.f32.mrf.mxu0
        %v1075 = vadd.f32 %v1010, %v1074
        %1076 = vdwg.mxu0
        %1077 = vmatpush.msra.mxu0 %v797
        %1078 = vmatpush.msra.mxu0 %v796
        %1079 = vmatpush.msra.mxu0 %v795
        %1080 = vmatpush.msra.mxu0 %v794
        %1081 = vmatpush.msra.mxu0 %v793
        %1082 = vmatpush.msra.mxu0 %v792
        %1083 = vmatpush.msra.mxu0 %v791
        %1084 = vmatpush.msra.mxu0 %v790
        %1085 = vmatpush.msra.mxu0 %v789
        %1086 = vmatpush.msra.mxu0 %v788
        %1087 = vmatpush.msra.mxu0 %v787
        %1088 = vmatpush.msra.mxu0 %v786
        %1089 = vmatpush.msra.mxu0 %v785
        %1090 = vmatpush.msra.mxu0 %v784
        %1091 = vmatpush.msra.mxu0 %v783
        %1092 = vmatpush.msra.mxu0 %v782
        %1093 = vmatmul.f32.gmra.mxu0 %v637
        %v1094 = vpop.f32.mrf.mxu0
        %v1095 = vadd.f32 %v1030, %v1094
        %1096 = vmatmul.f32.gmra.mxu0 %v638
        %v1097 = vpop.f32.mrf.mxu0
        %v1098 = vadd.f32 %v1033, %v1097
        %1099 = vmatmul.f32.gmra.mxu0 %v639
        %v1100 = vpop.f32.mrf.mxu0
        %v1101 = vadd.f32 %v1036, %v1100
        %1102 = vmatmul.f32.gmra.mxu0 %v640
        %v1103 = vpop.f32.mrf.mxu0
        %v1104 = vadd.f32 %v1039, %v1103
        %1105 = vmatmul.f32.gmra.mxu0 %v641
        %v1106 = vpop.f32.mrf.mxu0
        %v1107 = vadd.f32 %v1042, %v1106
        %1108 = vmatmul.f32.gmra.mxu0 %v642
        %v1109 = vpop.f32.mrf.mxu0
        %v1110 = vadd.f32 %v1045, %v1109
        %1111 = vmatmul.f32.gmra.mxu0 %v643
        %v1112 = vpop.f32.mrf.mxu0
        %v1113 = vadd.f32 %v1048, %v1112
        %1114 = vmatmul.f32.gmra.mxu0 %v644
        %v1115 = vpop.f32.mrf.mxu0
        %v1116 = vadd.f32 %v1051, %v1115
        %1117 = vmatmul.f32.gmra.mxu0 %v645
        %v1118 = vpop.f32.mrf.mxu0
        %v1119 = vadd.f32 %v1054, %v1118
        %1120 = vmatmul.f32.gmra.mxu0 %v646
        %v1121 = vpop.f32.mrf.mxu0
        %v1122 = vadd.f32 %v1057, %v1121
        %1123 = vmatmul.f32.gmra.mxu0 %v647
        %v1124 = vpop.f32.mrf.mxu0
        %v1125 = vadd.f32 %v1060, %v1124
        %1126 = vmatmul.f32.gmra.mxu0 %v648
        %v1127 = vpop.f32.mrf.mxu0
        %v1128 = vadd.f32 %v1063, %v1127
        %1129 = vmatmul.f32.gmra.mxu0 %v649
        %v1130 = vpop.f32.mrf.mxu0
        %v1131 = vadd.f32 %v1066, %v1130
        %1132 = vmatmul.f32.gmra.mxu0 %v650
        %v1133 = vpop.f32.mrf.mxu0
        %v1134 = vadd.f32 %v1069, %v1133
        %1135 = vmatmul.f32.gmra.mxu0 %v651
        %v1136 = vpop.f32.mrf.mxu0
        %v1137 = vadd.f32 %v1072, %v1136
        %1138 = vmatmul.f32.gmra.mxu0 %v652
        %v1139 = vpop.f32.mrf.mxu0
        %v1140 = vadd.f32 %v1075, %v1139
        %1141 = vdwg.mxu0
        %1142 = vmatpush.msra.mxu0 %v813
        %1143 = vmatpush.msra.mxu0 %v812
        %1144 = vmatpush.msra.mxu0 %v811
        %1145 = vmatpush.msra.mxu0 %v810
        %1146 = vmatpush.msra.mxu0 %v809
        %1147 = vmatpush.msra.mxu0 %v808
        %1148 = vmatpush.msra.mxu0 %v807
        %1149 = vmatpush.msra.mxu0 %v806
        %1150 = vmatpush.msra.mxu0 %v805
        %1151 = vmatpush.msra.mxu0 %v804
        %1152 = vmatpush.msra.mxu0 %v803
        %1153 = vmatpush.msra.mxu0 %v802
        %1154 = vmatpush.msra.mxu0 %v801
        %1155 = vmatpush.msra.mxu0 %v800
        %1156 = vmatpush.msra.mxu0 %v799
        %1157 = vmatpush.msra.mxu0 %v798
        %1158 = vmatmul.f32.gmra.mxu0 %v653
        %v1159 = vpop.f32.mrf.mxu0
        %v1160 = vadd.f32 %v1095, %v1159
        %1161 = vmatmul.f32.gmra.mxu0 %v654
        %v1162 = vpop.f32.mrf.mxu0
        %v1163 = vadd.f32 %v1098, %v1162
        %1164 = vmatmul.f32.gmra.mxu0 %v655
        %v1165 = vpop.f32.mrf.mxu0
        %v1166 = vadd.f32 %v1101, %v1165
        %1167 = vmatmul.f32.gmra.mxu0 %v656
        %v1168 = vpop.f32.mrf.mxu0
        %v1169 = vadd.f32 %v1104, %v1168
        %1170 = vmatmul.f32.gmra.mxu0 %v657
        %v1171 = vpop.f32.mrf.mxu0
        %v1172 = vadd.f32 %v1107, %v1171
        %1173 = vmatmul.f32.gmra.mxu0 %v658
        %v1174 = vpop.f32.mrf.mxu0
        %v1175 = vadd.f32 %v1110, %v1174
        %1176 = vmatmul.f32.gmra.mxu0 %v659
        %v1177 = vpop.f32.mrf.mxu0
        %v1178 = vadd.f32 %v1113, %v1177
        %1179 = vmatmul.f32.gmra.mxu0 %v660
        %v1180 = vpop.f32.mrf.mxu0
        %v1181 = vadd.f32 %v1116, %v1180
        %1182 = vmatmul.f32.gmra.mxu0 %v661
        %v1183 = vpop.f32.mrf.mxu0
        %v1184 = vadd.f32 %v1119, %v1183
        %1185 = vmatmul.f32.gmra.mxu0 %v662
        %v1186 = vpop.f32.mrf.mxu0
        %v1187 = vadd.f32 %v1122, %v1186
        %1188 = vmatmul.f32.gmra.mxu0 %v663
        %v1189 = vpop.f32.mrf.mxu0
        %v1190 = vadd.f32 %v1125, %v1189
        %1191 = vmatmul.f32.gmra.mxu0 %v664
        %v1192 = vpop.f32.mrf.mxu0
        %v1193 = vadd.f32 %v1128, %v1192
        %1194 = vmatmul.f32.gmra.mxu0 %v665
        %v1195 = vpop.f32.mrf.mxu0
        %v1196 = vadd.f32 %v1131, %v1195
        %1197 = vmatmul.f32.gmra.mxu0 %v666
        %v1198 = vpop.f32.mrf.mxu0
        %v1199 = vadd.f32 %v1134, %v1198
        %1200 = vmatmul.f32.gmra.mxu0 %v667
        %v1201 = vpop.f32.mrf.mxu0
        %v1202 = vadd.f32 %v1137, %v1201
        %1203 = vmatmul.f32.gmra.mxu0 %v668
        %v1204 = vpop.f32.mrf.mxu0
        %v1205 = vadd.f32 %v1140, %v1204
        %1206 = vdwg.mxu0
        %1207 = vmatpush.msra.mxu0 %v829
        %1208 = vmatpush.msra.mxu0 %v828
        %1209 = vmatpush.msra.mxu0 %v827
        %1210 = vmatpush.msra.mxu0 %v826
        %1211 = vmatpush.msra.mxu0 %v825
        %1212 = vmatpush.msra.mxu0 %v824
        %1213 = vmatpush.msra.mxu0 %v823
        %1214 = vmatpush.msra.mxu0 %v822
        %1215 = vmatpush.msra.mxu0 %v821
        %1216 = vmatpush.msra.mxu0 %v820
        %1217 = vmatpush.msra.mxu0 %v819
        %1218 = vmatpush.msra.mxu0 %v818
        %1219 = vmatpush.msra.mxu0 %v817
        %1220 = vmatpush.msra.mxu0 %v816
        %1221 = vmatpush.msra.mxu0 %v815
        %1222 = vmatpush.msra.mxu0 %v814
        %1223 = vmatmul.f32.gmra.mxu0 %v669
        %v1224 = vpop.f32.mrf.mxu0
        %v1225 = vadd.f32 %v1160, %v1224
        %1226 = vmatmul.f32.gmra.mxu0 %v670
        %v1227 = vpop.f32.mrf.mxu0
        %v1228 = vadd.f32 %v1163, %v1227
        %1229 = vmatmul.f32.gmra.mxu0 %v671
        %v1230 = vpop.f32.mrf.mxu0
        %v1231 = vadd.f32 %v1166, %v1230
        %1232 = vmatmul.f32.gmra.mxu0 %v672
        %v1233 = vpop.f32.mrf.mxu0
        %v1234 = vadd.f32 %v1169, %v1233
        %1235 = vmatmul.f32.gmra.mxu0 %v673
        %v1236 = vpop.f32.mrf.mxu0
        %v1237 = vadd.f32 %v1172, %v1236
        %1238 = vmatmul.f32.gmra.mxu0 %v674
        %v1239 = vpop.f32.mrf.mxu0
        %v1240 = vadd.f32 %v1175, %v1239
        %1241 = vmatmul.f32.gmra.mxu0 %v675
        %v1242 = vpop.f32.mrf.mxu0
        %v1243 = vadd.f32 %v1178, %v1242
        %1244 = vmatmul.f32.gmra.mxu0 %v676
        %v1245 = vpop.f32.mrf.mxu0
        %v1246 = vadd.f32 %v1181, %v1245
        %1247 = vmatmul.f32.gmra.mxu0 %v677
        %v1248 = vpop.f32.mrf.mxu0
        %v1249 = vadd.f32 %v1184, %v1248
        %1250 = vmatmul.f32.gmra.mxu0 %v678
        %v1251 = vpop.f32.mrf.mxu0
        %v1252 = vadd.f32 %v1187, %v1251
        %1253 = vmatmul.f32.gmra.mxu0 %v679
        %v1254 = vpop.f32.mrf.mxu0
        %v1255 = vadd.f32 %v1190, %v1254
        %1256 = vmatmul.f32.gmra.mxu0 %v680
        %v1257 = vpop.f32.mrf.mxu0
        %v1258 = vadd.f32 %v1193, %v1257
        %1259 = vmatmul.f32.gmra.mxu0 %v681
        %v1260 = vpop.f32.mrf.mxu0
        %v1261 = vadd.f32 %v1196, %v1260
        %1262 = vmatmul.f32.gmra.mxu0 %v682
        %v1263 = vpop.f32.mrf.mxu0
        %v1264 = vadd.f32 %v1199, %v1263
        %1265 = vmatmul.f32.gmra.mxu0 %v683
        %v1266 = vpop.f32.mrf.mxu0
        %v1267 = vadd.f32 %v1202, %v1266
        %1268 = vmatmul.f32.gmra.mxu0 %v684
        %v1269 = vpop.f32.mrf.mxu0
        %v1270 = vadd.f32 %v1205, %v1269
        %1271 = vdwg.mxu0
        %1272 = vmatpush.msra.mxu0 %v845
        %1273 = vmatpush.msra.mxu0 %v844
        %1274 = vmatpush.msra.mxu0 %v843
        %1275 = vmatpush.msra.mxu0 %v842
        %1276 = vmatpush.msra.mxu0 %v841
        %1277 = vmatpush.msra.mxu0 %v840
        %1278 = vmatpush.msra.mxu0 %v839
        %1279 = vmatpush.msra.mxu0 %v838
        %1280 = vmatpush.msra.mxu0 %v837
        %1281 = vmatpush.msra.mxu0 %v836
        %1282 = vmatpush.msra.mxu0 %v835
        %1283 = vmatpush.msra.mxu0 %v834
        %1284 = vmatpush.msra.mxu0 %v833
        %1285 = vmatpush.msra.mxu0 %v832
        %1286 = vmatpush.msra.mxu0 %v831
        %1287 = vmatpush.msra.mxu0 %v830
        %1288 = vmatmul.f32.gmra.mxu0 %v686
        %v1289 = vpop.f32.mrf.mxu0
        %v1290 = vadd.f32 %v1225, %v1289
        %1291 = vmatmul.f32.gmra.mxu0 %v687
        %v1292 = vpop.f32.mrf.mxu0
        %v1293 = vadd.f32 %v1228, %v1292
        %1294 = vmatmul.f32.gmra.mxu0 %v688
        %v1295 = vpop.f32.mrf.mxu0
        %v1296 = vadd.f32 %v1231, %v1295
        %1297 = vmatmul.f32.gmra.mxu0 %v689
        %v1298 = vpop.f32.mrf.mxu0
        %v1299 = vadd.f32 %v1234, %v1298
        %1300 = vmatmul.f32.gmra.mxu0 %v690
        %v1301 = vpop.f32.mrf.mxu0
        %v1302 = vadd.f32 %v1237, %v1301
        %1303 = vmatmul.f32.gmra.mxu0 %v691
        %v1304 = vpop.f32.mrf.mxu0
        %v1305 = vadd.f32 %v1240, %v1304
        %1306 = vmatmul.f32.gmra.mxu0 %v692
        %v1307 = vpop.f32.mrf.mxu0
        %v1308 = vadd.f32 %v1243, %v1307
        %1309 = vmatmul.f32.gmra.mxu0 %v693
        %v1310 = vpop.f32.mrf.mxu0
        %v1311 = vadd.f32 %v1246, %v1310
        %1312 = vmatmul.f32.gmra.mxu0 %v694
        %v1313 = vpop.f32.mrf.mxu0
        %v1314 = vadd.f32 %v1249, %v1313
        %1315 = vmatmul.f32.gmra.mxu0 %v695
        %v1316 = vpop.f32.mrf.mxu0
        %v1317 = vadd.f32 %v1252, %v1316
        %1318 = vmatmul.f32.gmra.mxu0 %v696
        %v1319 = vpop.f32.mrf.mxu0
        %v1320 = vadd.f32 %v1255, %v1319
        %1321 = vmatmul.f32.gmra.mxu0 %v697
        %v1322 = vpop.f32.mrf.mxu0
        %v1323 = vadd.f32 %v1258, %v1322
        %1324 = vmatmul.f32.gmra.mxu0 %v698
        %v1325 = vpop.f32.mrf.mxu0
        %v1326 = vadd.f32 %v1261, %v1325
        %1327 = vmatmul.f32.gmra.mxu0 %v699
        %v1328 = vpop.f32.mrf.mxu0
        %v1329 = vadd.f32 %v1264, %v1328
        %1330 = vmatmul.f32.gmra.mxu0 %v700
        %v1331 = vpop.f32.mrf.mxu0
        %v1332 = vadd.f32 %v1267, %v1331
        %1333 = vmatmul.f32.gmra.mxu0 %v701
        %v1334 = vpop.f32.mrf.mxu0
        %v1335 = vadd.f32 %v1270, %v1334
        %1336 = vdwg.mxu0
        %1337 = vmatpush.msra.mxu0 %v861
        %1338 = vmatpush.msra.mxu0 %v860
        %1339 = vmatpush.msra.mxu0 %v859
        %1340 = vmatpush.msra.mxu0 %v858
        %1341 = vmatpush.msra.mxu0 %v857
        %1342 = vmatpush.msra.mxu0 %v856
        %1343 = vmatpush.msra.mxu0 %v855
        %1344 = vmatpush.msra.mxu0 %v854
        %1345 = vmatpush.msra.mxu0 %v853
        %1346 = vmatpush.msra.mxu0 %v852
        %1347 = vmatpush.msra.mxu0 %v851
        %1348 = vmatpush.msra.mxu0 %v850
        %1349 = vmatpush.msra.mxu0 %v849
        %1350 = vmatpush.msra.mxu0 %v848
        %1351 = vmatpush.msra.mxu0 %v847
        %1352 = vmatpush.msra.mxu0 %v846
        %1353 = vmatmul.f32.gmra.mxu0 %v702
        %v1354 = vpop.f32.mrf.mxu0
        %v1355 = vadd.f32 %v1290, %v1354
        %1356 = vmatmul.f32.gmra.mxu0 %v703
        %v1357 = vpop.f32.mrf.mxu0
        %v1358 = vadd.f32 %v1293, %v1357
        %1359 = vmatmul.f32.gmra.mxu0 %v704
        %v1360 = vpop.f32.mrf.mxu0
        %v1361 = vadd.f32 %v1296, %v1360
        %1362 = vmatmul.f32.gmra.mxu0 %v705
        %v1363 = vpop.f32.mrf.mxu0
        %v1364 = vadd.f32 %v1299, %v1363
        %1365 = vmatmul.f32.gmra.mxu0 %v706
        %v1366 = vpop.f32.mrf.mxu0
        %v1367 = vadd.f32 %v1302, %v1366
        %1368 = vmatmul.f32.gmra.mxu0 %v707
        %v1369 = vpop.f32.mrf.mxu0
        %v1370 = vadd.f32 %v1305, %v1369
        %1371 = vmatmul.f32.gmra.mxu0 %v708
        %v1372 = vpop.f32.mrf.mxu0
        %v1373 = vadd.f32 %v1308, %v1372
        %1374 = vmatmul.f32.gmra.mxu0 %v709
        %v1375 = vpop.f32.mrf.mxu0
        %v1376 = vadd.f32 %v1311, %v1375
        %1377 = vmatmul.f32.gmra.mxu0 %v710
        %v1378 = vpop.f32.mrf.mxu0
        %v1379 = vadd.f32 %v1314, %v1378
        %1380 = vmatmul.f32.gmra.mxu0 %v711
        %v1381 = vpop.f32.mrf.mxu0
        %v1382 = vadd.f32 %v1317, %v1381
        %1383 = vmatmul.f32.gmra.mxu0 %v712
        %v1384 = vpop.f32.mrf.mxu0
        %v1385 = vadd.f32 %v1320, %v1384
        %1386 = vmatmul.f32.gmra.mxu0 %v713
        %v1387 = vpop.f32.mrf.mxu0
        %v1388 = vadd.f32 %v1323, %v1387
        %1389 = vmatmul.f32.gmra.mxu0 %v714
        %v1390 = vpop.f32.mrf.mxu0
        %v1391 = vadd.f32 %v1326, %v1390
        %1392 = vmatmul.f32.gmra.mxu0 %v715
        %v1393 = vpop.f32.mrf.mxu0
        %v1394 = vadd.f32 %v1329, %v1393
        %1395 = vmatmul.f32.gmra.mxu0 %v716
        %v1396 = vpop.f32.mrf.mxu0
        %v1397 = vadd.f32 %v1332, %v1396
        %1398 = vmatmul.f32.gmra.mxu0 %v717
        %v1399 = vpop.f32.mrf.mxu0
        %v1400 = vadd.f32 %v1335, %v1399
        %1401 = vdwg.mxu0
        %1402 = vmatpush.msra.mxu0 %v877
        %1403 = vmatpush.msra.mxu0 %v876
        %1404 = vmatpush.msra.mxu0 %v875
        %1405 = vmatpush.msra.mxu0 %v874
        %1406 = vmatpush.msra.mxu0 %v873
        %1407 = vmatpush.msra.mxu0 %v872
        %1408 = vmatpush.msra.mxu0 %v871
        %1409 = vmatpush.msra.mxu0 %v870
        %1410 = vmatpush.msra.mxu0 %v869
        %1411 = vmatpush.msra.mxu0 %v868
        %1412 = vmatpush.msra.mxu0 %v867
        %1413 = vmatpush.msra.mxu0 %v866
        %1414 = vmatpush.msra.mxu0 %v865
        %1415 = vmatpush.msra.mxu0 %v864
        %1416 = vmatpush.msra.mxu0 %v863
        %1417 = vmatpush.msra.mxu0 %v862
        %1418 = vmatmul.f32.gmra.mxu0 %v718
        %v1419 = vpop.f32.mrf.mxu0
        %v1420 = vadd.f32 %v1355, %v1419
        %1421 = vmatmul.f32.gmra.mxu0 %v719
        %v1422 = vpop.f32.mrf.mxu0
        %v1423 = vadd.f32 %v1358, %v1422
        %1424 = vmatmul.f32.gmra.mxu0 %v720
        %v1425 = vpop.f32.mrf.mxu0
        %v1426 = vadd.f32 %v1361, %v1425
        %1427 = vmatmul.f32.gmra.mxu0 %v721
        %v1428 = vpop.f32.mrf.mxu0
        %v1429 = vadd.f32 %v1364, %v1428
        %1430 = vmatmul.f32.gmra.mxu0 %v722
        %v1431 = vpop.f32.mrf.mxu0
        %v1432 = vadd.f32 %v1367, %v1431
        %1433 = vmatmul.f32.gmra.mxu0 %v723
        %v1434 = vpop.f32.mrf.mxu0
        %v1435 = vadd.f32 %v1370, %v1434
        %1436 = vmatmul.f32.gmra.mxu0 %v724
        %v1437 = vpop.f32.mrf.mxu0
        %v1438 = vadd.f32 %v1373, %v1437
        %1439 = vmatmul.f32.gmra.mxu0 %v725
        %v1440 = vpop.f32.mrf.mxu0
        %v1441 = vadd.f32 %v1376, %v1440
        %1442 = vmatmul.f32.gmra.mxu0 %v726
        %v1443 = vpop.f32.mrf.mxu0
        %v1444 = vadd.f32 %v1379, %v1443
        %1445 = vmatmul.f32.gmra.mxu0 %v727
        %v1446 = vpop.f32.mrf.mxu0
        %v1447 = vadd.f32 %v1382, %v1446
        %1448 = vmatmul.f32.gmra.mxu0 %v728
        %v1449 = vpop.f32.mrf.mxu0
        %v1450 = vadd.f32 %v1385, %v1449
        %1451 = vmatmul.f32.gmra.mxu0 %v729
        %v1452 = vpop.f32.mrf.mxu0
        %v1453 = vadd.f32 %v1388, %v1452
        %1454 = vmatmul.f32.gmra.mxu0 %v730
        %v1455 = vpop.f32.mrf.mxu0
        %v1456 = vadd.f32 %v1391, %v1455
        %1457 = vmatmul.f32.gmra.mxu0 %v731
        %v1458 = vpop.f32.mrf.mxu0
        %v1459 = vadd.f32 %v1394, %v1458
        %1460 = vmatmul.f32.gmra.mxu0 %v732
        %v1461 = vpop.f32.mrf.mxu0
        %v1462 = vadd.f32 %v1397, %v1461
        %1463 = vmatmul.f32.gmra.mxu0 %v733
        %v1464 = vpop.f32.mrf.mxu0
        %v1465 = vadd.f32 %v1400, %v1464
        %1466 = vdwg.mxu0
        %1467 = vst [vmem:[%s307] sm:$0xff] %v1420
        %1468 = vst [vmem:[%s307 + $0x8] sm:$0xff] %v1423
        %1469 = vst [vmem:[%s307 + $0x10] sm:$0xff] %v1426
        %1470 = vst [vmem:[%s307 + $0x18] sm:$0xff] %v1429
        %1471 = vst [vmem:[%s307 + $0x20] sm:$0xff] %v1432
        %1472 = vst [vmem:[%s307 + $0x28] sm:$0xff] %v1435
        %1473 = vst [vmem:[%s307 + $0x30] sm:$0xff] %v1438
        %1474 = vst [vmem:[%s307 + $0x38] sm:$0xff] %v1441
        %1475 = vst [vmem:[%s307 + $0x40] sm:$0xff] %v1444
        %1476 = vst [vmem:[%s307 + $0x48] sm:$0xff] %v1447
        %1477 = vst [vmem:[%s307 + $0x50] sm:$0xff] %v1450
        %1478 = vst [vmem:[%s307 + $0x58] sm:$0xff] %v1453
        %1479 = vst [vmem:[%s307 + $0x60] sm:$0xff] %v1456
        %1480 = vst [vmem:[%s307 + $0x68] sm:$0xff] %v1459
        %1481 = vst [vmem:[%s307 + $0x70] sm:$0xff] %v1462
        %1482 = vst [vmem:[%s307 + $0x78] sm:$0xff] %v1465
        %p1483 = scmp.eq.s32.totalorder %s33, 0
        // Predicated region
        $region89: #{tpu_custom_call.1} parent=39 // pred_check
          %p1484 = pneg %p1483
        $region90: #{tpu_custom_call.1} parent=39 // pred_check_branch
          %1486 = sbr.rel (%p1484) target = $region92
        $region91: #{tpu_custom_call.1} parent=39 // pred_region
          %1487 = vst [vmem:[%s314] sm:$0x3] 0.0
        $region92: #{tpu_custom_call.1} parent=39 // pred_fallthru
          _
        %v1488 = vadd.f32 %v1420, %v1423
        %v1489 = vadd.f32 %v1488, %v1426
        %v1490 = vadd.f32 %v1489, %v1429
        %v1491 = vadd.f32 %v1490, %v1432
        %v1492 = vadd.f32 %v1491, %v1435
        %v1493 = vadd.f32 %v1492, %v1438
        %v1494 = vadd.f32 %v1493, %v1441
        %v1495 = vadd.f32 %v1494, %v1444
        %v1496 = vadd.f32 %v1495, %v1447
        %v1497 = vadd.f32 %v1496, %v1450
        %v1498 = vadd.f32 %v1497, %v1453
        %v1499 = vadd.f32 %v1498, %v1456
        %v1500 = vadd.f32 %v1499, %v1459
        %v1501 = vadd.f32 %v1500, %v1462
        %v1502 = vadd.f32 %v1501, %v1465
        %v1503 = vrot.slane %v1502, 4
        %v1504 = vadd.f32 %v1502, %v1503
        %v1505 = vrot.slane %v1504, 2
        %v1506 = vadd.f32 %v1504, %v1505
        %v1507 = vrot.slane %v1506, 1
        %v1508 = vadd.f32 %v1506, %v1507
        %v1509 = vmul.f32 %v1420, %v1420
        %v1510 = vmul.f32 %v1423, %v1423
        %v1511 = vmul.f32 %v1426, %v1426
        %v1512 = vmul.f32 %v1429, %v1429
        %v1513 = vmul.f32 %v1432, %v1432
        %v1514 = vmul.f32 %v1435, %v1435
        %v1515 = vmul.f32 %v1438, %v1438
        %v1516 = vmul.f32 %v1441, %v1441
        %v1517 = vmul.f32 %v1444, %v1444
        %v1518 = vmul.f32 %v1447, %v1447
        %v1519 = vmul.f32 %v1450, %v1450
        %v1520 = vmul.f32 %v1453, %v1453
        %v1521 = vmul.f32 %v1456, %v1456
        %v1522 = vmul.f32 %v1459, %v1459
        %v1523 = vmul.f32 %v1462, %v1462
        %v1524 = vmul.f32 %v1465, %v1465
        %v1525 = vadd.f32 %v1509, %v1510
        %v1526 = vadd.f32 %v1525, %v1511
        %v1527 = vadd.f32 %v1526, %v1512
        %v1528 = vadd.f32 %v1527, %v1513
        %v1529 = vadd.f32 %v1528, %v1514
        %v1530 = vadd.f32 %v1529, %v1515
        %v1531 = vadd.f32 %v1530, %v1516
        %v1532 = vadd.f32 %v1531, %v1517
        %v1533 = vadd.f32 %v1532, %v1518
        %v1534 = vadd.f32 %v1533, %v1519
        %v1535 = vadd.f32 %v1534, %v1520
        %v1536 = vadd.f32 %v1535, %v1521
        %v1537 = vadd.f32 %v1536, %v1522
        %v1538 = vadd.f32 %v1537, %v1523
        %v1539 = vadd.f32 %v1538, %v1524
        %v1540 = vrot.slane %v1539, 4
        %v1541 = vadd.f32 %v1539, %v1540
        %v1542 = vrot.slane %v1541, 2
        %v1543 = vadd.f32 %v1541, %v1542
        %v1544 = vrot.slane %v1543, 1
        %v1545 = vadd.f32 %v1543, %v1544
        %v1546 = vld [vmem:[%s314] sm:$0x3]
        %vm1547 = vcmask 1040384
        %v1548 = vsel %vm1547, %v1508, %v1545
        %v1549 = vadd.f32 %v1546, %v1548
        %1550 = vst [vmem:[%s314] sm:$0x3] %v1549
        %s1551 = sand.u32 %s160, 1
        %s1552 = scalar_lea.sflag [#allocation5], %s1551
        %s1553 = sand.u32 %s160, 1
        %s1554 = smul.addr %s1553, 128
        %s1555 = scalar_lea.vmem [#allocation8], %s1554
        %s1556 = sand.u32 %s186, 1
        %s1557 = scalar_lea.sflag [#allocation10], %s1556
        %s1558 = sand.u32 %s186, 1
        %s1559 = smul.addr %s1558, 2
        %s1560 = scalar_lea.vmem [#allocation9], %s1559
        // Predicated region
        $region93: #{tpu_custom_call.1} parent=39 // pred_check
          %p1561 = pneg %p170
        $region94: #{tpu_custom_call.1} parent=39 // pred_check_branch
          %1563 = sbr.rel (%p1561) target = $region96
        $region95: #{tpu_custom_call.1} parent=39 // pred_region
          %s1564 = smul.u32 8, %s33
          %1566 = vsyncadd %s1552, 0
          %s1567 = smul.addr %s1564, 2
          %s1568 = smul.addr %s32, 32
          %s1569 = sadd.s32 %s1567, %s1568
          %s1570 = smul.addr %s1569, 8
          %s1571 = scalar_lea.hbm %s5, %s1570
          %s1572 = sshll.u32 %s1555, 4
          %s1573 = int_to_ptr.vmem [resolvable:$true] %s1572
          %s1574 = sshll.u32 %s1571, 4
          %s1575 = int_to_ptr.hbm [resolvable:$true] %s1574
          %1580 = dma.vmem_to_hbm [thread:$0]  %s1573, 2048, %s1575, %s1552, 128, 128, 8
        $region96: #{tpu_custom_call.1} parent=39 // pred_fallthru
          _
        // Predicated region
        $region97: #{tpu_custom_call.1} parent=39 // pred_check
          %p1581 = pneg %p196
        $region98: #{tpu_custom_call.1} parent=39 // pred_check_branch
          %1583 = sbr.rel (%p1581) target = $region100
        $region99: #{tpu_custom_call.1} parent=39 // pred_region
          %1585 = vsyncadd %s1557, 0
          %s1586 = smul.addr %s32, 2
          %s1587 = scalar_lea.hbm %s6, %s1586
          %s1589 = sshll.u32 %s1560, 4
          %s1590 = int_to_ptr.vmem [resolvable:$true] %s1589
          %s1591 = sshll.u32 %s1587, 4
          %s1592 = int_to_ptr.hbm [resolvable:$true] %s1591
          %1594 = dma.vmem_to_hbm [thread:$0]  %s1590, 32, %s1592, %s1557
        $region100: #{tpu_custom_call.1} parent=39 // pred_fallthru
          _
      $region40: #{tpu_custom_call.1} parent=5 // pred_fallthru
        _
      %p1595 = scmp.le.s32.totalorder 2, %s23
      // Predicated region
      $region101: #{tpu_custom_call.1} parent=5 // pred_check
        %p1596 = pneg %p1595
      $region102: #{tpu_custom_call.1} parent=5 // pred_check_branch
        %1598 = sbr.rel (%p1596) target = $region104
      $region103: #{tpu_custom_call.1} parent=5 // pred_region
        %s1599 = ssub.s32 %s23, 2
        // Predicated region
        $region105: #{tpu_custom_call.1} parent=103 // pred_check
          %p1600 = pneg %p176
        $region106: #{tpu_custom_call.1} parent=103 // pred_check_branch
          %1602 = sbr.rel (%p1600) target = $region108
        $region107: #{tpu_custom_call.1} parent=103 // pred_region
          %s1603 = sand.u32 %s161, 1
          %s1604 = scalar_lea.sflag [#allocation5], %s1603
          %s1605 = sand.u32 %s161, 1
          %s1606 = smul.addr %s1605, 128
          %s1607 = scalar_lea.vmem [#allocation8], %s1606
          %1609 = dma.done %s1604, 2048
        $region108: #{tpu_custom_call.1} parent=103 // pred_fallthru
          _
        // Predicated region
        $region109: #{tpu_custom_call.1} parent=103 // pred_check
          %p1610 = pneg %p202
        $region110: #{tpu_custom_call.1} parent=103 // pred_check_branch
          %1612 = sbr.rel (%p1610) target = $region112
        $region111: #{tpu_custom_call.1} parent=103 // pred_region
          %s1613 = sand.u32 %s187, 1
          %s1614 = scalar_lea.sflag [#allocation10], %s1613
          %s1615 = sand.u32 %s187, 1
          %s1616 = smul.addr %s1615, 2
          %s1617 = scalar_lea.vmem [#allocation9], %s1616
          %1619 = dma.done %s1614, 32
        $region112: #{tpu_custom_call.1} parent=103 // pred_fallthru
          _
      $region104: #{tpu_custom_call.1} parent=5 // pred_fallthru
        _
    $region6: #{tpu_custom_call.1} parent=1 // loop_footer
      %s27 = sadd.s32 1, %s23
    $region7: #{tpu_custom_call.1} parent=1 // loop_footer_branch
      %22 = sbr.rel target = $region3
    $region8: #{tpu_custom_call.1} parent=1 // loop_exit
      _
    %1620 = vsyncpa [#allocation4], 1
    %s1621 = scalar_lea.sflag [#allocation4], 1
    %1622 = vsyncpa %s1621, 1
    %1623 = vsyncpa [#allocation7], 1
    %1624 = vsyncpa [#allocation5], 1
    %s1625 = scalar_lea.sflag [#allocation5], 1
    %1626 = vsyncpa %s1625, 1
    %1627 = vsyncpa [#allocation10], 1
    %s1628 = scalar_lea.sflag [#allocation10], 1
    %1629 = vsyncpa %s1628, 1

</llo_original>
